<compile_context>
chip_gen: v6e
topology: v6e:2x2x1
jax: 0.10.0
libtpu: 0.0.40
codegen_flags: <defaults>
</compile_context>

<pallas_src>
import functools

import jax
import jax.numpy as jnp
from jax import lax
from jax.experimental import pallas as pl
from jax.experimental.pallas import tpu as pltpu

HIDDEN_SIZE = 128
CHAR_ARR = [c for c in "SEPabcdefghijklmnopqrstuvwxyz"]
VOCAB_SIZE = len(CHAR_ARR)  # 29


def seq2seq_kernel(
    enc_x_ref, dec_x_ref, h0_ref,
    w_ih_e_ref, w_hh_e_ref, b_e_ref,
    w_ih_d_ref, w_hh_d_ref, b_d_ref,
    w_fc_ref, b_fc_ref,
    out_ref,
    enc_proj_ref, dec_proj_ref, dec_h_ref,
):
    T_enc, Bp, H = enc_proj_ref.shape
    T_dec = dec_proj_ref.shape[0]
    Vp = out_ref.shape[2]

    # ---- hoisted input projections: one big MXU matmul per RNN (M = T*Bp) ----
    enc_proj = (
        jnp.dot(enc_x_ref[...], w_ih_e_ref[...], preferred_element_type=jnp.float32)
        + b_e_ref[...]
    )  # (T_enc*Bp, H)
    enc_proj_ref[...] = enc_proj.reshape(T_enc, Bp, H)

    dec_proj = (
        jnp.dot(dec_x_ref[...], w_ih_d_ref[...], preferred_element_type=jnp.float32)
        + b_d_ref[...]
    )  # (T_dec*Bp, H)
    dec_proj_ref[...] = dec_proj.reshape(T_dec, Bp, H)

    # ---- loop-invariant weight loads hoisted out of the serial loops ----
    w_hh_e = w_hh_e_ref[...]  # (H, H), stays resident in vregs
    w_hh_d = w_hh_d_ref[...]

    # ---- encoder recurrence: only tanh(h @ W_hh + proj[t]) on the serial path ----
    def enc_body(t, h):
        return jnp.tanh(
            jnp.dot(h, w_hh_e, preferred_element_type=jnp.float32) + enc_proj_ref[t]
        )

    h = lax.fori_loop(0, T_enc, enc_body, h0_ref[...], unroll=True)

    # ---- decoder recurrence: store hiddens, defer the FC head ----
    def dec_body(t, h):
        h_new = jnp.tanh(
            jnp.dot(h, w_hh_d, preferred_element_type=jnp.float32) + dec_proj_ref[t]
        )
        dec_h_ref[t] = h_new
        return h_new

    lax.fori_loop(0, T_dec, dec_body, h, unroll=True)

    # ---- deferred FC head: one (T_dec*Bp, H) @ (H, Vp) matmul + one lane-dense store ----
    hs = dec_h_ref[...].reshape(T_dec * Bp, H)
    out = jnp.dot(hs, w_fc_ref[...], preferred_element_type=jnp.float32) + b_fc_ref[...]
    out_ref[...] = out.reshape(T_dec, Bp, Vp).astype(out_ref.dtype)


def _pad_to(x, shape):
    pads = [(0, s - d) for d, s in zip(x.shape, shape)]
    return jnp.pad(x, pads)


def init_params(key, hidden=HIDDEN_SIZE, vocab=VOCAB_SIZE):
    """Deterministic init mimicking PyTorch's U(-1/sqrt(H), 1/sqrt(H))."""
    bound = 1.0 / jnp.sqrt(jnp.float32(hidden))
    keys = jax.random.split(key, 10)
    u = lambda k, shape: jax.random.uniform(
        k, shape, jnp.float32, minval=-bound, maxval=bound
    )
    return {
        "enc_w_ih": u(keys[0], (hidden, vocab)),
        "enc_w_hh": u(keys[1], (hidden, hidden)),
        "enc_b_ih": u(keys[2], (hidden,)),
        "enc_b_hh": u(keys[3], (hidden,)),
        "dec_w_ih": u(keys[4], (hidden, vocab)),
        "dec_w_hh": u(keys[5], (hidden, hidden)),
        "dec_b_ih": u(keys[6], (hidden,)),
        "dec_b_hh": u(keys[7], (hidden,)),
        "fc_w": u(keys[8], (vocab, hidden)),
        "fc_b": u(keys[9], (vocab,)),
    }


@jax.jit
def seq2seq_forward(params, enc_input, enc_hidden, dec_input):
    """enc_input: (B, T_enc, V), enc_hidden: (1, B, H), dec_input: (B, T_dec, V).
    Returns (T_dec, B, V) — same (time-major) output as the PyTorch module."""
    B, T_enc, V = enc_input.shape
    T_dec = dec_input.shape[1]
    H = HIDDEN_SIZE

    Bp = ((B + 7) // 8) * 8
    Vp = ((V + 127) // 128) * 128

    # time-major, pad, then flatten (T, Bp, Vp) -> (T*Bp, Vp) so the input projection
    # is a single lane/sublane-aligned matmul inside the kernel.
    enc_x = _pad_to(
        jnp.transpose(enc_input, (1, 0, 2)).astype(jnp.float32), (T_enc, Bp, Vp)
    ).reshape(T_enc * Bp, Vp)
    dec_x = _pad_to(
        jnp.transpose(dec_input, (1, 0, 2)).astype(jnp.float32), (T_dec, Bp, Vp)
    ).reshape(T_dec * Bp, Vp)
    h0 = _pad_to(enc_hidden[0].astype(jnp.float32), (Bp, H))

    w_ih_e = _pad_to(params["enc_w_ih"].T, (Vp, H))           # (Vp, H)
    w_hh_e = params["enc_w_hh"].T                              # (H, H)
    b_e = (params["enc_b_ih"] + params["enc_b_hh"]).reshape(1, H)
    w_ih_d = _pad_to(params["dec_w_ih"].T, (Vp, H))
    w_hh_d = params["dec_w_hh"].T
    b_d = (params["dec_b_ih"] + params["dec_b_hh"]).reshape(1, H)
    w_fc = _pad_to(params["fc_w"].T, (H, Vp))                  # (H, Vp)
    b_fc = _pad_to(params["fc_b"].reshape(1, V), (1, Vp))

    vmem = pl.BlockSpec(memory_space=pltpu.MemorySpace.VMEM)
    out = pl.pallas_call(
        seq2seq_kernel,
        out_shape=jax.ShapeDtypeStruct((T_dec, Bp, Vp), jnp.float32),
        in_specs=[vmem] * 11,
        out_specs=vmem,
        scratch_shapes=[
            pltpu.VMEM((T_enc, Bp, H), jnp.float32),   # hoisted encoder projections
            pltpu.VMEM((T_dec, Bp, H), jnp.float32),   # hoisted decoder projections
            pltpu.VMEM((T_dec, Bp, H), jnp.float32),   # decoder hidden states
        ],
        compiler_params=pltpu.CompilerParams(
            vmem_limit_bytes=32 * 1024 * 1024,
        ),
    )(enc_x, dec_x, h0, w_ih_e, w_hh_e, b_e, w_ih_d, w_hh_d, b_d, w_fc, b_fc)

    # TODO(synk): for large B / long T, add a time-chunk grid (BlockSpec over T) and a
    # "parallel" batch axis so activations need not be fully VMEM-resident.
    return out[:, :B, :V]


def seq2seq_reference(params, enc_input, enc_hidden, dec_input):
    """Pure-JAX reference (mirrors torch.nn.RNN math) for correctness check."""
    enc_x = jnp.transpose(enc_input, (1, 0, 2)).astype(jnp.float32)
    dec_x = jnp.transpose(dec_input, (1, 0, 2)).astype(jnp.float32)
    h = enc_hidden[0].astype(jnp.float32)

    def step(w_ih, w_hh, b_ih, b_hh, h, x_t):
        return jnp.tanh(x_t @ w_ih.T + b_ih + h @ w_hh.T + b_hh)

    def enc_scan(h, x_t):
        h = step(params["enc_w_ih"], params["enc_w_hh"],
                 params["enc_b_ih"], params["enc_b_hh"], h, x_t)
        return h, None

    h, _ = lax.scan(enc_scan, h, enc_x)

    def dec_scan(h, x_t):
        h = step(params["dec_w_ih"], params["dec_w_hh"],
                 params["dec_b_ih"], params["dec_b_hh"], h, x_t)
        return h, h

    _, outs = lax.scan(dec_scan, h, dec_x)
    return outs @ params["fc_w"].T + params["fc_b"]


if __name__ == "__main__":
    key = jax.random.PRNGKey(0)
    k_params, k_enc, k_dec, k_h = jax.random.split(key, 4)

    B, T_enc, T_dec = 2, 8, 8
    params = init_params(k_params)

    # one-hot token inputs (like the seq2seq character model)
    enc_ids = jax.random.randint(k_enc, (B, T_enc), 0, VOCAB_SIZE)
    dec_ids = jax.random.randint(k_dec, (B, T_dec), 0, VOCAB_SIZE)
    enc_input = jax.nn.one_hot(enc_ids, VOCAB_SIZE, dtype=jnp.float32)   # (B, T_enc, V)
    dec_input = jax.nn.one_hot(dec_ids, VOCAB_SIZE, dtype=jnp.float32)   # (B, T_dec, V)
    enc_hidden = 0.1 * jax.random.normal(k_h, (1, B, HIDDEN_SIZE), jnp.float32)

    out = seq2seq_forward(params, enc_input, enc_hidden, dec_input)
    out = jax.block_until_ready(out)

    ref = jax.block_until_ready(seq2seq_reference(params, enc_input, enc_hidden, dec_input))
    assert out.shape == (T_dec, B, VOCAB_SIZE), out.shape
    assert jnp.allclose(out, ref, atol=1e-4, rtol=1e-4), float(jnp.max(jnp.abs(out - ref)))

    print("KERNEL_OK")
</pallas_src>

<mosaic_0001>
module attributes {stable_mosaic.version = 11 : i64} {
  func.func @seq2seq_kernel(%arg0: memref<64x128xf32, #tpu.memory_space<vmem>>, %arg1: memref<64x128xf32, #tpu.memory_space<vmem>>, %arg2: memref<8x128xf32, #tpu.memory_space<vmem>>, %arg3: memref<128x128xf32, #tpu.memory_space<vmem>>, %arg4: memref<128x128xf32, #tpu.memory_space<vmem>>, %arg5: memref<1x128xf32, #tpu.memory_space<vmem>>, %arg6: memref<128x128xf32, #tpu.memory_space<vmem>>, %arg7: memref<128x128xf32, #tpu.memory_space<vmem>>, %arg8: memref<1x128xf32, #tpu.memory_space<vmem>>, %arg9: memref<128x128xf32, #tpu.memory_space<vmem>>, %arg10: memref<1x128xf32, #tpu.memory_space<vmem>>, %arg11: memref<8x8x128xf32, #tpu.memory_space<vmem>>, %arg12: memref<8x8x128xf32, #tpu.memory_space<vmem>>, %arg13: memref<8x8x128xf32, #tpu.memory_space<vmem>>, %arg14: memref<8x8x128xf32, #tpu.memory_space<vmem>>) attributes {dimension_semantics = [], scalar_prefetch = 0 : i64, scratch_operands = 3 : i64, tpu.core_type = #tpu.core_type<tc>} {
    %c0 = arith.constant 0 : index
    %c0_0 = arith.constant 0 : index
    %0 = vector.load %arg0[%c0, %c0_0] : memref<64x128xf32, #tpu.memory_space<vmem>>, vector<64x128xf32>
    %c0_1 = arith.constant 0 : index
    %c0_2 = arith.constant 0 : index
    %1 = vector.load %arg3[%c0_1, %c0_2] : memref<128x128xf32, #tpu.memory_space<vmem>>, vector<128x128xf32>
    %cst = arith.constant dense<0.000000e+00> : vector<64x128xf32>
    %2 = tpu.matmul %0, %1, %cst {dimension_numbers = #tpu.dot_dimension_numbers<[1], [0], [0], [1], [0, 0, 1, 1], [], []>} : vector<64x128xf32>, vector<128x128xf32>, vector<64x128xf32> -> vector<64x128xf32>
    %c0_3 = arith.constant 0 : index
    %c0_4 = arith.constant 0 : index
    %3 = vector.load %arg5[%c0_3, %c0_4] : memref<1x128xf32, #tpu.memory_space<vmem>>, vector<1x128xf32>
    %4 = vector.broadcast %3 : vector<1x128xf32> to vector<64x128xf32>
    %5 = arith.addf %2, %4 : vector<64x128xf32>
    %6 = vector.shape_cast %5 : vector<64x128xf32> to vector<8x8x128xf32>
    %c0_5 = arith.constant 0 : index
    %c0_6 = arith.constant 0 : index
    %c0_7 = arith.constant 0 : index
    %7 = vector.load %arg12[%c0_5, %c0_6, %c0_7] : memref<8x8x128xf32, #tpu.memory_space<vmem>>, vector<8x8x128xf32>
    tpu.vector_store %arg12[%c0_5, %c0_6, %c0_7], %6 {strides = array<i32>} : memref<8x8x128xf32, #tpu.memory_space<vmem>>, vector<8x8x128xf32>,
    %c0_8 = arith.constant 0 : index
    %c0_9 = arith.constant 0 : index
    %8 = vector.load %arg1[%c0_8, %c0_9] : memref<64x128xf32, #tpu.memory_space<vmem>>, vector<64x128xf32>
    %c0_10 = arith.constant 0 : index
    %c0_11 = arith.constant 0 : index
    %9 = vector.load %arg6[%c0_10, %c0_11] : memref<128x128xf32, #tpu.memory_space<vmem>>, vector<128x128xf32>
    %cst_12 = arith.constant dense<0.000000e+00> : vector<64x128xf32>
    %10 = tpu.matmul %8, %9, %cst_12 {dimension_numbers = #tpu.dot_dimension_numbers<[1], [0], [0], [1], [0, 0, 1, 1], [], []>} : vector<64x128xf32>, vector<128x128xf32>, vector<64x128xf32> -> vector<64x128xf32>
    %c0_13 = arith.constant 0 : index
    %c0_14 = arith.constant 0 : index
    %11 = vector.load %arg8[%c0_13, %c0_14] : memref<1x128xf32, #tpu.memory_space<vmem>>, vector<1x128xf32>
    %12 = vector.broadcast %11 : vector<1x128xf32> to vector<64x128xf32>
    %13 = arith.addf %10, %12 : vector<64x128xf32>
    %14 = vector.shape_cast %13 : vector<64x128xf32> to vector<8x8x128xf32>
    %c0_15 = arith.constant 0 : index
    %c0_16 = arith.constant 0 : index
    %c0_17 = arith.constant 0 : index
    %15 = vector.load %arg13[%c0_15, %c0_16, %c0_17] : memref<8x8x128xf32, #tpu.memory_space<vmem>>, vector<8x8x128xf32>
    tpu.vector_store %arg13[%c0_15, %c0_16, %c0_17], %14 {strides = array<i32>} : memref<8x8x128xf32, #tpu.memory_space<vmem>>, vector<8x8x128xf32>,
    %c0_18 = arith.constant 0 : index
    %c0_19 = arith.constant 0 : index
    %16 = vector.load %arg4[%c0_18, %c0_19] : memref<128x128xf32, #tpu.memory_space<vmem>>, vector<128x128xf32>
    %c0_20 = arith.constant 0 : index
    %c0_21 = arith.constant 0 : index
    %17 = vector.load %arg7[%c0_20, %c0_21] : memref<128x128xf32, #tpu.memory_space<vmem>>, vector<128x128xf32>
    %c0_22 = arith.constant 0 : index
    %c0_23 = arith.constant 0 : index
    %18 = vector.load %arg2[%c0_22, %c0_23] : memref<8x128xf32, #tpu.memory_space<vmem>>, vector<8x128xf32>
    %c0_i32 = arith.constant 0 : i32
    %cst_24 = arith.constant dense<0.000000e+00> : vector<8x128xf32>
    %19 = tpu.matmul %18, %16, %cst_24 {dimension_numbers = #tpu.dot_dimension_numbers<[1], [0], [0], [1], [0, 0, 1, 1], [], []>} : vector<8x128xf32>, vector<128x128xf32>, vector<8x128xf32> -> vector<8x128xf32>
    %20 = arith.index_cast %c0_i32 : i32 to index
    %c0_25 = arith.constant 0 : index
    %c0_26 = arith.constant 0 : index
    %21 = vector.load %arg12[%20, %c0_25, %c0_26] : memref<8x8x128xf32, #tpu.memory_space<vmem>>, vector<1x8x128xf32>
    %22 = vector.shape_cast %21 : vector<1x8x128xf32> to vector<8x128xf32>
    %23 = arith.addf %19, %22 : vector<8x128xf32>
    %24 = math.tanh %23 : vector<8x128xf32>
    %c1_i32 = arith.constant 1 : i32
    %cst_27 = arith.constant dense<0.000000e+00> : vector<8x128xf32>
    %25 = tpu.matmul %24, %16, %cst_27 {dimension_numbers = #tpu.dot_dimension_numbers<[1], [0], [0], [1], [0, 0, 1, 1], [], []>} : vector<8x128xf32>, vector<128x128xf32>, vector<8x128xf32> -> vector<8x128xf32>
    %26 = arith.index_cast %c1_i32 : i32 to index
    %c0_28 = arith.constant 0 : index
    %c0_29 = arith.constant 0 : index
    %27 = vector.load %arg12[%26, %c0_28, %c0_29] : memref<8x8x128xf32, #tpu.memory_space<vmem>>, vector<1x8x128xf32>
    %28 = vector.shape_cast %27 : vector<1x8x128xf32> to vector<8x128xf32>
    %29 = arith.addf %25, %28 : vector<8x128xf32>
    %30 = math.tanh %29 : vector<8x128xf32>
    %c2_i32 = arith.constant 2 : i32
    %cst_30 = arith.constant dense<0.000000e+00> : vector<8x128xf32>
    %31 = tpu.matmul %30, %16, %cst_30 {dimension_numbers = #tpu.dot_dimension_numbers<[1], [0], [0], [1], [0, 0, 1, 1], [], []>} : vector<8x128xf32>, vector<128x128xf32>, vector<8x128xf32> -> vector<8x128xf32>
    %32 = arith.index_cast %c2_i32 : i32 to index
    %c0_31 = arith.constant 0 : index
    %c0_32 = arith.constant 0 : index
    %33 = vector.load %arg12[%32, %c0_31, %c0_32] : memref<8x8x128xf32, #tpu.memory_space<vmem>>, vector<1x8x128xf32>
    %34 = vector.shape_cast %33 : vector<1x8x128xf32> to vector<8x128xf32>
    %35 = arith.addf %31, %34 : vector<8x128xf32>
    %36 = math.tanh %35 : vector<8x128xf32>
    %c3_i32 = arith.constant 3 : i32
    %cst_33 = arith.constant dense<0.000000e+00> : vector<8x128xf32>
    %37 = tpu.matmul %36, %16, %cst_33 {dimension_numbers = #tpu.dot_dimension_numbers<[1], [0], [0], [1], [0, 0, 1, 1], [], []>} : vector<8x128xf32>, vector<128x128xf32>, vector<8x128xf32> -> vector<8x128xf32>
    %38 = arith.index_cast %c3_i32 : i32 to index
    %c0_34 = arith.constant 0 : index
    %c0_35 = arith.constant 0 : index
    %39 = vector.load %arg12[%38, %c0_34, %c0_35] : memref<8x8x128xf32, #tpu.memory_space<vmem>>, vector<1x8x128xf32>
    %40 = vector.shape_cast %39 : vector<1x8x128xf32> to vector<8x128xf32>
    %41 = arith.addf %37, %40 : vector<8x128xf32>
    %42 = math.tanh %41 : vector<8x128xf32>
    %c4_i32 = arith.constant 4 : i32
    %cst_36 = arith.constant dense<0.000000e+00> : vector<8x128xf32>
    %43 = tpu.matmul %42, %16, %cst_36 {dimension_numbers = #tpu.dot_dimension_numbers<[1], [0], [0], [1], [0, 0, 1, 1], [], []>} : vector<8x128xf32>, vector<128x128xf32>, vector<8x128xf32> -> vector<8x128xf32>
    %44 = arith.index_cast %c4_i32 : i32 to index
    %c0_37 = arith.constant 0 : index
    %c0_38 = arith.constant 0 : index
    %45 = vector.load %arg12[%44, %c0_37, %c0_38] : memref<8x8x128xf32, #tpu.memory_space<vmem>>, vector<1x8x128xf32>
    %46 = vector.shape_cast %45 : vector<1x8x128xf32> to vector<8x128xf32>
    %47 = arith.addf %43, %46 : vector<8x128xf32>
    %48 = math.tanh %47 : vector<8x128xf32>
    %c5_i32 = arith.constant 5 : i32
    %cst_39 = arith.constant dense<0.000000e+00> : vector<8x128xf32>
    %49 = tpu.matmul %48, %16, %cst_39 {dimension_numbers = #tpu.dot_dimension_numbers<[1], [0], [0], [1], [0, 0, 1, 1], [], []>} : vector<8x128xf32>, vector<128x128xf32>, vector<8x128xf32> -> vector<8x128xf32>
    %50 = arith.index_cast %c5_i32 : i32 to index
    %c0_40 = arith.constant 0 : index
    %c0_41 = arith.constant 0 : index
    %51 = vector.load %arg12[%50, %c0_40, %c0_41] : memref<8x8x128xf32, #tpu.memory_space<vmem>>, vector<1x8x128xf32>
    %52 = vector.shape_cast %51 : vector<1x8x128xf32> to vector<8x128xf32>
    %53 = arith.addf %49, %52 : vector<8x128xf32>
    %54 = math.tanh %53 : vector<8x128xf32>
    %c6_i32 = arith.constant 6 : i32
    %cst_42 = arith.constant dense<0.000000e+00> : vector<8x128xf32>
    %55 = tpu.matmul %54, %16, %cst_42 {dimension_numbers = #tpu.dot_dimension_numbers<[1], [0], [0], [1], [0, 0, 1, 1], [], []>} : vector<8x128xf32>, vector<128x128xf32>, vector<8x128xf32> -> vector<8x128xf32>
    %56 = arith.index_cast %c6_i32 : i32 to index
    %c0_43 = arith.constant 0 : index
    %c0_44 = arith.constant 0 : index
    %57 = vector.load %arg12[%56, %c0_43, %c0_44] : memref<8x8x128xf32, #tpu.memory_space<vmem>>, vector<1x8x128xf32>
    %58 = vector.shape_cast %57 : vector<1x8x128xf32> to vector<8x128xf32>
    %59 = arith.addf %55, %58 : vector<8x128xf32>
    %60 = math.tanh %59 : vector<8x128xf32>
    %c7_i32 = arith.constant 7 : i32
    %cst_45 = arith.constant dense<0.000000e+00> : vector<8x128xf32>
    %61 = tpu.matmul %60, %16, %cst_45 {dimension_numbers = #tpu.dot_dimension_numbers<[1], [0], [0], [1], [0, 0, 1, 1], [], []>} : vector<8x128xf32>, vector<128x128xf32>, vector<8x128xf32> -> vector<8x128xf32>
    %62 = arith.index_cast %c7_i32 : i32 to index
    %c0_46 = arith.constant 0 : index
    %c0_47 = arith.constant 0 : index
    %63 = vector.load %arg12[%62, %c0_46, %c0_47] : memref<8x8x128xf32, #tpu.memory_space<vmem>>, vector<1x8x128xf32>
    %64 = vector.shape_cast %63 : vector<1x8x128xf32> to vector<8x128xf32>
    %65 = arith.addf %61, %64 : vector<8x128xf32>
    %66 = math.tanh %65 : vector<8x128xf32>
    %c8_i32 = arith.constant 8 : i32
    %c0_i32_48 = arith.constant 0 : i32
    %cst_49 = arith.constant dense<0.000000e+00> : vector<8x128xf32>
    %67 = tpu.matmul %66, %17, %cst_49 {dimension_numbers = #tpu.dot_dimension_numbers<[1], [0], [0], [1], [0, 0, 1, 1], [], []>} : vector<8x128xf32>, vector<128x128xf32>, vector<8x128xf32> -> vector<8x128xf32>
    %68 = arith.index_cast %c0_i32_48 : i32 to index
    %c0_50 = arith.constant 0 : index
    %c0_51 = arith.constant 0 : index
    %69 = vector.load %arg13[%68, %c0_50, %c0_51] : memref<8x8x128xf32, #tpu.memory_space<vmem>>, vector<1x8x128xf32>
    %70 = vector.shape_cast %69 : vector<1x8x128xf32> to vector<8x128xf32>
    %71 = arith.addf %67, %70 : vector<8x128xf32>
    %72 = math.tanh %71 : vector<8x128xf32>
    %73 = arith.index_cast %c0_i32_48 : i32 to index
    %c0_52 = arith.constant 0 : index
    %c0_53 = arith.constant 0 : index
    %74 = vector.load %arg14[%73, %c0_52, %c0_53] : memref<8x8x128xf32, #tpu.memory_space<vmem>>, vector<1x8x128xf32>
    %75 = vector.shape_cast %74 : vector<1x8x128xf32> to vector<8x128xf32>
    %76 = vector.shape_cast %72 : vector<8x128xf32> to vector<1x8x128xf32>
    tpu.vector_store %arg14[%73, %c0_52, %c0_53], %76 {strides = array<i32>} : memref<8x8x128xf32, #tpu.memory_space<vmem>>, vector<1x8x128xf32>,
    %c1_i32_54 = arith.constant 1 : i32
    %cst_55 = arith.constant dense<0.000000e+00> : vector<8x128xf32>
    %77 = tpu.matmul %72, %17, %cst_55 {dimension_numbers = #tpu.dot_dimension_numbers<[1], [0], [0], [1], [0, 0, 1, 1], [], []>} : vector<8x128xf32>, vector<128x128xf32>, vector<8x128xf32> -> vector<8x128xf32>
    %78 = arith.index_cast %c1_i32_54 : i32 to index
    %c0_56 = arith.constant 0 : index
    %c0_57 = arith.constant 0 : index
    %79 = vector.load %arg13[%78, %c0_56, %c0_57] : memref<8x8x128xf32, #tpu.memory_space<vmem>>, vector<1x8x128xf32>
    %80 = vector.shape_cast %79 : vector<1x8x128xf32> to vector<8x128xf32>
    %81 = arith.addf %77, %80 : vector<8x128xf32>
    %82 = math.tanh %81 : vector<8x128xf32>
    %83 = arith.index_cast %c1_i32_54 : i32 to index
    %c0_58 = arith.constant 0 : index
    %c0_59 = arith.constant 0 : index
    %84 = vector.load %arg14[%83, %c0_58, %c0_59] : memref<8x8x128xf32, #tpu.memory_space<vmem>>, vector<1x8x128xf32>
    %85 = vector.shape_cast %84 : vector<1x8x128xf32> to vector<8x128xf32>
    %86 = vector.shape_cast %82 : vector<8x128xf32> to vector<1x8x128xf32>
    tpu.vector_store %arg14[%83, %c0_58, %c0_59], %86 {strides = array<i32>} : memref<8x8x128xf32, #tpu.memory_space<vmem>>, vector<1x8x128xf32>,
    %c2_i32_60 = arith.constant 2 : i32
    %cst_61 = arith.constant dense<0.000000e+00> : vector<8x128xf32>
    %87 = tpu.matmul %82, %17, %cst_61 {dimension_numbers = #tpu.dot_dimension_numbers<[1], [0], [0], [1], [0, 0, 1, 1], [], []>} : vector<8x128xf32>, vector<128x128xf32>, vector<8x128xf32> -> vector<8x128xf32>
    %88 = arith.index_cast %c2_i32_60 : i32 to index
    %c0_62 = arith.constant 0 : index
    %c0_63 = arith.constant 0 : index
    %89 = vector.load %arg13[%88, %c0_62, %c0_63] : memref<8x8x128xf32, #tpu.memory_space<vmem>>, vector<1x8x128xf32>
    %90 = vector.shape_cast %89 : vector<1x8x128xf32> to vector<8x128xf32>
    %91 = arith.addf %87, %90 : vector<8x128xf32>
    %92 = math.tanh %91 : vector<8x128xf32>
    %93 = arith.index_cast %c2_i32_60 : i32 to index
    %c0_64 = arith.constant 0 : index
    %c0_65 = arith.constant 0 : index
    %94 = vector.load %arg14[%93, %c0_64, %c0_65] : memref<8x8x128xf32, #tpu.memory_space<vmem>>, vector<1x8x128xf32>
    %95 = vector.shape_cast %94 : vector<1x8x128xf32> to vector<8x128xf32>
    %96 = vector.shape_cast %92 : vector<8x128xf32> to vector<1x8x128xf32>
    tpu.vector_store %arg14[%93, %c0_64, %c0_65], %96 {strides = array<i32>} : memref<8x8x128xf32, #tpu.memory_space<vmem>>, vector<1x8x128xf32>,
    %c3_i32_66 = arith.constant 3 : i32
    %cst_67 = arith.constant dense<0.000000e+00> : vector<8x128xf32>
    %97 = tpu.matmul %92, %17, %cst_67 {dimension_numbers = #tpu.dot_dimension_numbers<[1], [0], [0], [1], [0, 0, 1, 1], [], []>} : vector<8x128xf32>, vector<128x128xf32>, vector<8x128xf32> -> vector<8x128xf32>
    %98 = arith.index_cast %c3_i32_66 : i32 to index
    %c0_68 = arith.constant 0 : index
    %c0_69 = arith.constant 0 : index
    %99 = vector.load %arg13[%98, %c0_68, %c0_69] : memref<8x8x128xf32, #tpu.memory_space<vmem>>, vector<1x8x128xf32>
    %100 = vector.shape_cast %99 : vector<1x8x128xf32> to vector<8x128xf32>
    %101 = arith.addf %97, %100 : vector<8x128xf32>
    %102 = math.tanh %101 : vector<8x128xf32>
    %103 = arith.index_cast %c3_i32_66 : i32 to index
    %c0_70 = arith.constant 0 : index
    %c0_71 = arith.constant 0 : index
    %104 = vector.load %arg14[%103, %c0_70, %c0_71] : memref<8x8x128xf32, #tpu.memory_space<vmem>>, vector<1x8x128xf32>
    %105 = vector.shape_cast %104 : vector<1x8x128xf32> to vector<8x128xf32>
    %106 = vector.shape_cast %102 : vector<8x128xf32> to vector<1x8x128xf32>
    tpu.vector_store %arg14[%103, %c0_70, %c0_71], %106 {strides = array<i32>} : memref<8x8x128xf32, #tpu.memory_space<vmem>>, vector<1x8x128xf32>,
    %c4_i32_72 = arith.constant 4 : i32
    %cst_73 = arith.constant dense<0.000000e+00> : vector<8x128xf32>
    %107 = tpu.matmul %102, %17, %cst_73 {dimension_numbers = #tpu.dot_dimension_numbers<[1], [0], [0], [1], [0, 0, 1, 1], [], []>} : vector<8x128xf32>, vector<128x128xf32>, vector<8x128xf32> -> vector<8x128xf32>
    %108 = arith.index_cast %c4_i32_72 : i32 to index
    %c0_74 = arith.constant 0 : index
    %c0_75 = arith.constant 0 : index
    %109 = vector.load %arg13[%108, %c0_74, %c0_75] : memref<8x8x128xf32, #tpu.memory_space<vmem>>, vector<1x8x128xf32>
    %110 = vector.shape_cast %109 : vector<1x8x128xf32> to vector<8x128xf32>
    %111 = arith.addf %107, %110 : vector<8x128xf32>
    %112 = math.tanh %111 : vector<8x128xf32>
    %113 = arith.index_cast %c4_i32_72 : i32 to index
    %c0_76 = arith.constant 0 : index
    %c0_77 = arith.constant 0 : index
    %114 = vector.load %arg14[%113, %c0_76, %c0_77] : memref<8x8x128xf32, #tpu.memory_space<vmem>>, vector<1x8x128xf32>
    %115 = vector.shape_cast %114 : vector<1x8x128xf32> to vector<8x128xf32>
    %116 = vector.shape_cast %112 : vector<8x128xf32> to vector<1x8x128xf32>
    tpu.vector_store %arg14[%113, %c0_76, %c0_77], %116 {strides = array<i32>} : memref<8x8x128xf32, #tpu.memory_space<vmem>>, vector<1x8x128xf32>,
    %c5_i32_78 = arith.constant 5 : i32
    %cst_79 = arith.constant dense<0.000000e+00> : vector<8x128xf32>
    %117 = tpu.matmul %112, %17, %cst_79 {dimension_numbers = #tpu.dot_dimension_numbers<[1], [0], [0], [1], [0, 0, 1, 1], [], []>} : vector<8x128xf32>, vector<128x128xf32>, vector<8x128xf32> -> vector<8x128xf32>
    %118 = arith.index_cast %c5_i32_78 : i32 to index
    %c0_80 = arith.constant 0 : index
    %c0_81 = arith.constant 0 : index
    %119 = vector.load %arg13[%118, %c0_80, %c0_81] : memref<8x8x128xf32, #tpu.memory_space<vmem>>, vector<1x8x128xf32>
    %120 = vector.shape_cast %119 : vector<1x8x128xf32> to vector<8x128xf32>
    %121 = arith.addf %117, %120 : vector<8x128xf32>
    %122 = math.tanh %121 : vector<8x128xf32>
    %123 = arith.index_cast %c5_i32_78 : i32 to index
    %c0_82 = arith.constant 0 : index
    %c0_83 = arith.constant 0 : index
    %124 = vector.load %arg14[%123, %c0_82, %c0_83] : memref<8x8x128xf32, #tpu.memory_space<vmem>>, vector<1x8x128xf32>
    %125 = vector.shape_cast %124 : vector<1x8x128xf32> to vector<8x128xf32>
    %126 = vector.shape_cast %122 : vector<8x128xf32> to vector<1x8x128xf32>
    tpu.vector_store %arg14[%123, %c0_82, %c0_83], %126 {strides = array<i32>} : memref<8x8x128xf32, #tpu.memory_space<vmem>>, vector<1x8x128xf32>,
    %c6_i32_84 = arith.constant 6 : i32
    %cst_85 = arith.constant dense<0.000000e+00> : vector<8x128xf32>
    %127 = tpu.matmul %122, %17, %cst_85 {dimension_numbers = #tpu.dot_dimension_numbers<[1], [0], [0], [1], [0, 0, 1, 1], [], []>} : vector<8x128xf32>, vector<128x128xf32>, vector<8x128xf32> -> vector<8x128xf32>
    %128 = arith.index_cast %c6_i32_84 : i32 to index
    %c0_86 = arith.constant 0 : index
    %c0_87 = arith.constant 0 : index
    %129 = vector.load %arg13[%128, %c0_86, %c0_87] : memref<8x8x128xf32, #tpu.memory_space<vmem>>, vector<1x8x128xf32>
    %130 = vector.shape_cast %129 : vector<1x8x128xf32> to vector<8x128xf32>
    %131 = arith.addf %127, %130 : vector<8x128xf32>
    %132 = math.tanh %131 : vector<8x128xf32>
    %133 = arith.index_cast %c6_i32_84 : i32 to index
    %c0_88 = arith.constant 0 : index
    %c0_89 = arith.constant 0 : index
    %134 = vector.load %arg14[%133, %c0_88, %c0_89] : memref<8x8x128xf32, #tpu.memory_space<vmem>>, vector<1x8x128xf32>
    %135 = vector.shape_cast %134 : vector<1x8x128xf32> to vector<8x128xf32>
    %136 = vector.shape_cast %132 : vector<8x128xf32> to vector<1x8x128xf32>
    tpu.vector_store %arg14[%133, %c0_88, %c0_89], %136 {strides = array<i32>} : memref<8x8x128xf32, #tpu.memory_space<vmem>>, vector<1x8x128xf32>,
    %c7_i32_90 = arith.constant 7 : i32
    %cst_91 = arith.constant dense<0.000000e+00> : vector<8x128xf32>
    %137 = tpu.matmul %132, %17, %cst_91 {dimension_numbers = #tpu.dot_dimension_numbers<[1], [0], [0], [1], [0, 0, 1, 1], [], []>} : vector<8x128xf32>, vector<128x128xf32>, vector<8x128xf32> -> vector<8x128xf32>
    %138 = arith.index_cast %c7_i32_90 : i32 to index
    %c0_92 = arith.constant 0 : index
    %c0_93 = arith.constant 0 : index
    %139 = vector.load %arg13[%138, %c0_92, %c0_93] : memref<8x8x128xf32, #tpu.memory_space<vmem>>, vector<1x8x128xf32>
    %140 = vector.shape_cast %139 : vector<1x8x128xf32> to vector<8x128xf32>
    %141 = arith.addf %137, %140 : vector<8x128xf32>
    %142 = math.tanh %141 : vector<8x128xf32>
    %143 = arith.index_cast %c7_i32_90 : i32 to index
    %c0_94 = arith.constant 0 : index
    %c0_95 = arith.constant 0 : index
    %144 = vector.load %arg14[%143, %c0_94, %c0_95] : memref<8x8x128xf32, #tpu.memory_space<vmem>>, vector<1x8x128xf32>
    %145 = vector.shape_cast %144 : vector<1x8x128xf32> to vector<8x128xf32>
    %146 = vector.shape_cast %142 : vector<8x128xf32> to vector<1x8x128xf32>
    tpu.vector_store %arg14[%143, %c0_94, %c0_95], %146 {strides = array<i32>} : memref<8x8x128xf32, #tpu.memory_space<vmem>>, vector<1x8x128xf32>,
    %c8_i32_96 = arith.constant 8 : i32
    %c0_97 = arith.constant 0 : index
    %c0_98 = arith.constant 0 : index
    %c0_99 = arith.constant 0 : index
    %147 = vector.load %arg14[%c0_97, %c0_98, %c0_99] : memref<8x8x128xf32, #tpu.memory_space<vmem>>, vector<8x8x128xf32>
    %148 = vector.shape_cast %147 : vector<8x8x128xf32> to vector<64x128xf32>
    %c0_100 = arith.constant 0 : index
    %c0_101 = arith.constant 0 : index
    %149 = vector.load %arg9[%c0_100, %c0_101] : memref<128x128xf32, #tpu.memory_space<vmem>>, vector<128x128xf32>
    %cst_102 = arith.constant dense<0.000000e+00> : vector<64x128xf32>
    %150 = tpu.matmul %148, %149, %cst_102 {dimension_numbers = #tpu.dot_dimension_numbers<[1], [0], [0], [1], [0, 0, 1, 1], [], []>} : vector<64x128xf32>, vector<128x128xf32>, vector<64x128xf32> -> vector<64x128xf32>
    %c0_103 = arith.constant 0 : index
    %c0_104 = arith.constant 0 : index
    %151 = vector.load %arg10[%c0_103, %c0_104] : memref<1x128xf32, #tpu.memory_space<vmem>>, vector<1x128xf32>
    %152 = vector.broadcast %151 : vector<1x128xf32> to vector<64x128xf32>
    %153 = arith.addf %150, %152 : vector<64x128xf32>
    %154 = vector.shape_cast %153 : vector<64x128xf32> to vector<8x8x128xf32>
    %c0_105 = arith.constant 0 : index
    %c0_106 = arith.constant 0 : index
    %c0_107 = arith.constant 0 : index
    %155 = vector.load %arg11[%c0_105, %c0_106, %c0_107] : memref<8x8x128xf32, #tpu.memory_space<vmem>>, vector<8x8x128xf32>
    tpu.vector_store %arg11[%c0_105, %c0_106, %c0_107], %154 {strides = array<i32>} : memref<8x8x128xf32, #tpu.memory_space<vmem>>, vector<8x8x128xf32>,
    return
  }
}

</mosaic_0001>

<llo_original>
// kernel: seq2seq_forward.1
$region0: #{seq2seq_forward.1}
  #allocation0 [shape = 'u32[]', space=smem, size = 0x4, offset = 0x4, fixed_abs, tag = 'smem constant byte address 0x4 - core index']
  #allocation1 [shape = 'u32[144,128]{1,0:T(1,128)}', space=vmem, size = 0x12000, scoped, tag = 'internal scratch']
  #allocation2 [shape = 'f32[8,8,128]{2,1,0:T(8,128)}', space=vmem, size = 0x8000, scoped, tag = 'scratch operand']
  #allocation3 [shape = 'f32[8,8,128]{2,1,0:T(8,128)}', space=vmem, size = 0x8000, scoped, tag = 'scratch operand']
  #allocation4 [shape = 'f32[8,8,128]{2,1,0:T(8,128)}', space=vmem, size = 0x8000, scoped, tag = 'scratch operand']
  %s0 = inlined_call_operand.vmem [shape: f32[64,128], index: 0, kind: input, shape index: {}]
  %s1 = inlined_call_operand.vmem [shape: f32[64,128], index: 1, kind: input, shape index: {}]
  %s2 = inlined_call_operand.vmem [shape: f32[8,128], index: 2, kind: input, shape index: {}]
  %s3 = inlined_call_operand.vmem [shape: f32[128,128], index: 3, kind: input, shape index: {}]
  %s4 = inlined_call_operand.vmem [shape: f32[128,128], index: 4, kind: input, shape index: {}]
  %s5 = inlined_call_operand.vmem [shape: f32[1,128], index: 5, kind: input, shape index: {}]
  %s6 = inlined_call_operand.vmem [shape: f32[128,128], index: 6, kind: input, shape index: {}]
  %s7 = inlined_call_operand.vmem [shape: f32[128,128], index: 7, kind: input, shape index: {}]
  %s8 = inlined_call_operand.vmem [shape: f32[1,128], index: 8, kind: input, shape index: {}]
  %s9 = inlined_call_operand.vmem [shape: f32[128,128], index: 9, kind: input, shape index: {}]
  %s10 = inlined_call_operand.vmem [shape: f32[1,128], index: 10, kind: input, shape index: {}]
  %s11 = inlined_call_operand.vmem [shape: f32[8,8,128], index: 11, kind: output, shape index: {}]
  %s12 = sld [smem:[#allocation0]]
  $region54: #{seq2seq_forward.1} parent=0
    _
  %s14 = ssub.s32 1, %s12
  %s15 = scalar_select 0, %s14, %s12
  // Predicated region
  $region2: #{seq2seq_forward.1} parent=0 // pred_check
    _
  $region3: #{seq2seq_forward.1} parent=0 // pred_check_branch
    %17 = sbr.rel (0) target = $region5
  $region4: #{seq2seq_forward.1} parent=0 // pred_region
    _
  $region5: #{seq2seq_forward.1} parent=0 // pred_fallthru
    _
  // Predicated region
  $region6: #{seq2seq_forward.1} parent=0 // pred_check
    _
  $region7: #{seq2seq_forward.1} parent=0 // pred_check_branch
    %19 = sbr.rel (0) target = $region9
  $region8: #{seq2seq_forward.1} parent=0 // pred_region
    _
  $region9: #{seq2seq_forward.1} parent=0 // pred_fallthru
    _
  // Predicated region
  $region10: #{seq2seq_forward.1} parent=0 // pred_check
    _
  $region11: #{seq2seq_forward.1} parent=0 // pred_check_branch
    %21 = sbr.rel (0) target = $region13
  $region12: #{seq2seq_forward.1} parent=0 // pred_region
    _
  $region13: #{seq2seq_forward.1} parent=0 // pred_fallthru
    _
  // Predicated region
  $region14: #{seq2seq_forward.1} parent=0 // pred_check
    _
  $region15: #{seq2seq_forward.1} parent=0 // pred_check_branch
    %23 = sbr.rel (0) target = $region17
  $region16: #{seq2seq_forward.1} parent=0 // pred_region
    _
  $region17: #{seq2seq_forward.1} parent=0 // pred_fallthru
    _
  // Predicated region
  $region18: #{seq2seq_forward.1} parent=0 // pred_check
    _
  $region19: #{seq2seq_forward.1} parent=0 // pred_check_branch
    %25 = sbr.rel (0) target = $region21
  $region20: #{seq2seq_forward.1} parent=0 // pred_region
    _
  $region21: #{seq2seq_forward.1} parent=0 // pred_fallthru
    _
  // Predicated region
  $region22: #{seq2seq_forward.1} parent=0 // pred_check
    _
  $region23: #{seq2seq_forward.1} parent=0 // pred_check_branch
    %27 = sbr.rel (0) target = $region25
  $region24: #{seq2seq_forward.1} parent=0 // pred_region
    _
  $region25: #{seq2seq_forward.1} parent=0 // pred_fallthru
    _
  // Predicated region
  $region26: #{seq2seq_forward.1} parent=0 // pred_check
    _
  $region27: #{seq2seq_forward.1} parent=0 // pred_check_branch
    %29 = sbr.rel (0) target = $region29
  $region28: #{seq2seq_forward.1} parent=0 // pred_region
    _
  $region29: #{seq2seq_forward.1} parent=0 // pred_fallthru
    _
  // Predicated region
  $region30: #{seq2seq_forward.1} parent=0 // pred_check
    _
  $region31: #{seq2seq_forward.1} parent=0 // pred_check_branch
    %31 = sbr.rel (0) target = $region33
  $region32: #{seq2seq_forward.1} parent=0 // pred_region
    _
  $region33: #{seq2seq_forward.1} parent=0 // pred_fallthru
    _
  // Predicated region
  $region34: #{seq2seq_forward.1} parent=0 // pred_check
    _
  $region35: #{seq2seq_forward.1} parent=0 // pred_check_branch
    %33 = sbr.rel (0) target = $region37
  $region36: #{seq2seq_forward.1} parent=0 // pred_region
    _
  $region37: #{seq2seq_forward.1} parent=0 // pred_fallthru
    _
  // Predicated region
  $region38: #{seq2seq_forward.1} parent=0 // pred_check
    _
  $region39: #{seq2seq_forward.1} parent=0 // pred_check_branch
    %35 = sbr.rel (0) target = $region41
  $region40: #{seq2seq_forward.1} parent=0 // pred_region
    _
  $region41: #{seq2seq_forward.1} parent=0 // pred_fallthru
    _
  // Predicated region
  $region42: #{seq2seq_forward.1} parent=0 // pred_check
    _
  $region43: #{seq2seq_forward.1} parent=0 // pred_check_branch
    %37 = sbr.rel (0) target = $region45
  $region44: #{seq2seq_forward.1} parent=0 // pred_region
    _
  $region45: #{seq2seq_forward.1} parent=0 // pred_fallthru
    _
  %v38 = vld [vmem:[%s0] sm:$0xff]
  %v39 = vld [vmem:[%s0 + $0x8] sm:$0xff]
  %v40 = vld [vmem:[%s0 + $0x10] sm:$0xff]
  %v41 = vld [vmem:[%s0 + $0x18] sm:$0xff]
  %v42 = vld [vmem:[%s0 + $0x20] sm:$0xff]
  %v43 = vld [vmem:[%s0 + $0x28] sm:$0xff]
  %v44 = vld [vmem:[%s0 + $0x30] sm:$0xff]
  %v45 = vld [vmem:[%s0 + $0x38] sm:$0xff]
  %v46 = vld [vmem:[%s3] sm:$0xff]
  %v47 = vld [vmem:[%s3 + $0x8] sm:$0xff]
  %v48 = vld [vmem:[%s3 + $0x10] sm:$0xff]
  %v49 = vld [vmem:[%s3 + $0x18] sm:$0xff]
  %v50 = vld [vmem:[%s3 + $0x20] sm:$0xff]
  %v51 = vld [vmem:[%s3 + $0x28] sm:$0xff]
  %v52 = vld [vmem:[%s3 + $0x30] sm:$0xff]
  %v53 = vld [vmem:[%s3 + $0x38] sm:$0xff]
  %v54 = vld [vmem:[%s3 + $0x40] sm:$0xff]
  %v55 = vld [vmem:[%s3 + $0x48] sm:$0xff]
  %v56 = vld [vmem:[%s3 + $0x50] sm:$0xff]
  %v57 = vld [vmem:[%s3 + $0x58] sm:$0xff]
  %v58 = vld [vmem:[%s3 + $0x60] sm:$0xff]
  %v59 = vld [vmem:[%s3 + $0x68] sm:$0xff]
  %v60 = vld [vmem:[%s3 + $0x70] sm:$0xff]
  %v61 = vld [vmem:[%s3 + $0x78] sm:$0xff]
  %v62 = vld [vmem:[%s5] sm:$0x1]
  %v64 = vlaneseq
  %v65 = vshrl.u32 %v64, 7
  %v66 = vsub.s32 0, %v65
  %v67 = vrot.slane %v62, %v66
  %69 = vmatprep.subr.mxu0 0.0
  %70 = vmatpush1.msra.mxu0 %v61
  %71 = vmatprep.subr.mxu0 0.0
  %72 = vmatpush1.msra.mxu0 %v60
  %73 = vmatprep.subr.mxu0 0.0
  %74 = vmatpush1.msra.mxu0 %v59
  %75 = vmatprep.subr.mxu0 0.0
  %76 = vmatpush1.msra.mxu0 %v58
  %77 = vmatprep.subr.mxu0 0.0
  %78 = vmatpush1.msra.mxu0 %v57
  %79 = vmatprep.subr.mxu0 0.0
  %80 = vmatpush1.msra.mxu0 %v56
  %81 = vmatprep.subr.mxu0 0.0
  %82 = vmatpush1.msra.mxu0 %v55
  %83 = vmatprep.subr.mxu0 0.0
  %84 = vmatpush1.msra.mxu0 %v54
  %85 = vmatprep.subr.mxu0 0.0
  %86 = vmatpush1.msra.mxu0 %v53
  %87 = vmatprep.subr.mxu0 0.0
  %88 = vmatpush1.msra.mxu0 %v52
  %89 = vmatprep.subr.mxu0 0.0
  %90 = vmatpush1.msra.mxu0 %v51
  %91 = vmatprep.subr.mxu0 0.0
  %92 = vmatpush1.msra.mxu0 %v50
  %93 = vmatprep.subr.mxu0 0.0
  %94 = vmatpush1.msra.mxu0 %v49
  %95 = vmatprep.subr.mxu0 0.0
  %96 = vmatpush1.msra.mxu0 %v48
  %97 = vmatprep.subr.mxu0 0.0
  %98 = vmatpush1.msra.mxu0 %v47
  %99 = vmatprep.subr.mxu0 0.0
  %100 = vmatpush1.msra.mxu0 %v46
  %101 = vmatprep.subr.mxu0 0.0
  %102 = vmatpush2.msra.mxu0 0.0
  %103 = vmatprep.subr.mxu0 0.0
  %104 = vmatpush2.msra.mxu0 0.0
  %105 = vmatprep.subr.mxu0 0.0
  %106 = vmatpush2.msra.mxu0 0.0
  %107 = vmatprep.subr.mxu0 0.0
  %108 = vmatpush2.msra.mxu0 0.0
  %109 = vmatprep.subr.mxu0 0.0
  %110 = vmatpush2.msra.mxu0 0.0
  %111 = vmatprep.subr.mxu0 0.0
  %112 = vmatpush2.msra.mxu0 0.0
  %113 = vmatprep.subr.mxu0 0.0
  %114 = vmatpush2.msra.mxu0 0.0
  %115 = vmatprep.subr.mxu0 0.0
  %116 = vmatpush2.msra.mxu0 0.0
  %117 = vmatprep.subr.mxu0 0.0
  %118 = vmatpush2.msra.mxu0 0.0
  %119 = vmatprep.subr.mxu0 0.0
  %120 = vmatpush2.msra.mxu0 0.0
  %121 = vmatprep.subr.mxu0 0.0
  %122 = vmatpush2.msra.mxu0 0.0
  %123 = vmatprep.subr.mxu0 0.0
  %124 = vmatpush2.msra.mxu0 0.0
  %125 = vmatprep.subr.mxu0 0.0
  %126 = vmatpush2.msra.mxu0 0.0
  %127 = vmatprep.subr.mxu0 0.0
  %128 = vmatpush2.msra.mxu0 0.0
  %129 = vmatprep.subr.mxu0 0.0
  %130 = vmatpush2.msra.mxu0 0.0
  %131 = vmatprep.subr.mxu0 0.0
  %132 = vmatpush2.msra.mxu0 0.0
  %133 = vmatprep.mubr.f32.mxu0 0.0
  %134 = vmatmul.mubr.f32.gmra.mxu0 %v38
  %v135 = vpop.f32.mrf.mxu0
  %v136 = vadd.f32 %v67, %v135
  %v137 = vpop.f32.mrf.mxu0
  %138 = vmatprep.mubr.f32.mxu0 0.0
  %139 = vmatmul.mubr.f32.gmra.mxu0 %v39
  %v140 = vpop.f32.mrf.mxu0
  %v141 = vadd.f32 %v67, %v140
  %v142 = vpop.f32.mrf.mxu0
  %143 = vmatprep.mubr.f32.mxu0 0.0
  %144 = vmatmul.mubr.f32.gmra.mxu0 %v40
  %v145 = vpop.f32.mrf.mxu0
  %v146 = vadd.f32 %v67, %v145
  %v147 = vpop.f32.mrf.mxu0
  %148 = vmatprep.mubr.f32.mxu0 0.0
  %149 = vmatmul.mubr.f32.gmra.mxu0 %v41
  %v150 = vpop.f32.mrf.mxu0
  %v151 = vadd.f32 %v67, %v150
  %v152 = vpop.f32.mrf.mxu0
  %153 = vmatprep.mubr.f32.mxu0 0.0
  %154 = vmatmul.mubr.f32.gmra.mxu0 %v42
  %v155 = vpop.f32.mrf.mxu0
  %v156 = vadd.f32 %v67, %v155
  %v157 = vpop.f32.mrf.mxu0
  %158 = vmatprep.mubr.f32.mxu0 0.0
  %159 = vmatmul.mubr.f32.gmra.mxu0 %v43
  %v160 = vpop.f32.mrf.mxu0
  %v161 = vadd.f32 %v67, %v160
  %v162 = vpop.f32.mrf.mxu0
  %163 = vmatprep.mubr.f32.mxu0 0.0
  %164 = vmatmul.mubr.f32.gmra.mxu0 %v44
  %v165 = vpop.f32.mrf.mxu0
  %v166 = vadd.f32 %v67, %v165
  %v167 = vpop.f32.mrf.mxu0
  %168 = vmatprep.mubr.f32.mxu0 0.0
  %169 = vmatmul.mubr.f32.gmra.mxu0 %v45
  %v170 = vpop.f32.mrf.mxu0
  %v171 = vadd.f32 %v67, %v170
  %v172 = vpop.f32.mrf.mxu0
  %173 = vdwg.mxu0
  %174 = vst [vmem:[#allocation2] sm:$0xff] %v136
  %175 = vst [vmem:[#allocation2 + $0x8] sm:$0xff] %v141
  %176 = vst [vmem:[#allocation2 + $0x10] sm:$0xff] %v146
  %177 = vst [vmem:[#allocation2 + $0x18] sm:$0xff] %v151
  %178 = vst [vmem:[#allocation2 + $0x20] sm:$0xff] %v156
  %179 = vst [vmem:[#allocation2 + $0x28] sm:$0xff] %v161
  %180 = vst [vmem:[#allocation2 + $0x30] sm:$0xff] %v166
  %181 = vst [vmem:[#allocation2 + $0x38] sm:$0xff] %v171
  %v182 = vld [vmem:[%s1] sm:$0xff]
  %v183 = vld [vmem:[%s1 + $0x8] sm:$0xff]
  %v184 = vld [vmem:[%s1 + $0x10] sm:$0xff]
  %v185 = vld [vmem:[%s1 + $0x18] sm:$0xff]
  %v186 = vld [vmem:[%s1 + $0x20] sm:$0xff]
  %v187 = vld [vmem:[%s1 + $0x28] sm:$0xff]
  %v188 = vld [vmem:[%s1 + $0x30] sm:$0xff]
  %v189 = vld [vmem:[%s1 + $0x38] sm:$0xff]
  %v190 = vld [vmem:[%s6] sm:$0xff]
  %v191 = vld [vmem:[%s6 + $0x8] sm:$0xff]
  %v192 = vld [vmem:[%s6 + $0x10] sm:$0xff]
  %v193 = vld [vmem:[%s6 + $0x18] sm:$0xff]
  %v194 = vld [vmem:[%s6 + $0x20] sm:$0xff]
  %v195 = vld [vmem:[%s6 + $0x28] sm:$0xff]
  %v196 = vld [vmem:[%s6 + $0x30] sm:$0xff]
  %v197 = vld [vmem:[%s6 + $0x38] sm:$0xff]
  %v198 = vld [vmem:[%s6 + $0x40] sm:$0xff]
  %v199 = vld [vmem:[%s6 + $0x48] sm:$0xff]
  %v200 = vld [vmem:[%s6 + $0x50] sm:$0xff]
  %v201 = vld [vmem:[%s6 + $0x58] sm:$0xff]
  %v202 = vld [vmem:[%s6 + $0x60] sm:$0xff]
  %v203 = vld [vmem:[%s6 + $0x68] sm:$0xff]
  %v204 = vld [vmem:[%s6 + $0x70] sm:$0xff]
  %v205 = vld [vmem:[%s6 + $0x78] sm:$0xff]
  %v206 = vld [vmem:[%s8] sm:$0x1]
  %v208 = vlaneseq
  %v209 = vshrl.u32 %v208, 7
  %v210 = vsub.s32 0, %v209
  %v211 = vrot.slane %v206, %v210
  %213 = vmatprep.subr.mxu0 0.0
  %214 = vmatpush1.msra.mxu0 %v205
  %215 = vmatprep.subr.mxu0 0.0
  %216 = vmatpush1.msra.mxu0 %v204
  %217 = vmatprep.subr.mxu0 0.0
  %218 = vmatpush1.msra.mxu0 %v203
  %219 = vmatprep.subr.mxu0 0.0
  %220 = vmatpush1.msra.mxu0 %v202
  %221 = vmatprep.subr.mxu0 0.0
  %222 = vmatpush1.msra.mxu0 %v201
  %223 = vmatprep.subr.mxu0 0.0
  %224 = vmatpush1.msra.mxu0 %v200
  %225 = vmatprep.subr.mxu0 0.0
  %226 = vmatpush1.msra.mxu0 %v199
  %227 = vmatprep.subr.mxu0 0.0
  %228 = vmatpush1.msra.mxu0 %v198
  %229 = vmatprep.subr.mxu0 0.0
  %230 = vmatpush1.msra.mxu0 %v197
  %231 = vmatprep.subr.mxu0 0.0
  %232 = vmatpush1.msra.mxu0 %v196
  %233 = vmatprep.subr.mxu0 0.0
  %234 = vmatpush1.msra.mxu0 %v195
  %235 = vmatprep.subr.mxu0 0.0
  %236 = vmatpush1.msra.mxu0 %v194
  %237 = vmatprep.subr.mxu0 0.0
  %238 = vmatpush1.msra.mxu0 %v193
  %239 = vmatprep.subr.mxu0 0.0
  %240 = vmatpush1.msra.mxu0 %v192
  %241 = vmatprep.subr.mxu0 0.0
  %242 = vmatpush1.msra.mxu0 %v191
  %243 = vmatprep.subr.mxu0 0.0
  %244 = vmatpush1.msra.mxu0 %v190
  %245 = vmatprep.subr.mxu0 0.0
  %246 = vmatpush2.msra.mxu0 0.0
  %247 = vmatprep.subr.mxu0 0.0
  %248 = vmatpush2.msra.mxu0 0.0
  %249 = vmatprep.subr.mxu0 0.0
  %250 = vmatpush2.msra.mxu0 0.0
  %251 = vmatprep.subr.mxu0 0.0
  %252 = vmatpush2.msra.mxu0 0.0
  %253 = vmatprep.subr.mxu0 0.0
  %254 = vmatpush2.msra.mxu0 0.0
  %255 = vmatprep.subr.mxu0 0.0
  %256 = vmatpush2.msra.mxu0 0.0
  %257 = vmatprep.subr.mxu0 0.0
  %258 = vmatpush2.msra.mxu0 0.0
  %259 = vmatprep.subr.mxu0 0.0
  %260 = vmatpush2.msra.mxu0 0.0
  %261 = vmatprep.subr.mxu0 0.0
  %262 = vmatpush2.msra.mxu0 0.0
  %263 = vmatprep.subr.mxu0 0.0
  %264 = vmatpush2.msra.mxu0 0.0
  %265 = vmatprep.subr.mxu0 0.0
  %266 = vmatpush2.msra.mxu0 0.0
  %267 = vmatprep.subr.mxu0 0.0
  %268 = vmatpush2.msra.mxu0 0.0
  %269 = vmatprep.subr.mxu0 0.0
  %270 = vmatpush2.msra.mxu0 0.0
  %271 = vmatprep.subr.mxu0 0.0
  %272 = vmatpush2.msra.mxu0 0.0
  %273 = vmatprep.subr.mxu0 0.0
  %274 = vmatpush2.msra.mxu0 0.0
  %275 = vmatprep.subr.mxu0 0.0
  %276 = vmatpush2.msra.mxu0 0.0
  %277 = vmatprep.mubr.f32.mxu0 0.0
  %278 = vmatmul.mubr.f32.gmra.mxu0 %v182
  %v279 = vpop.f32.mrf.mxu0
  %v280 = vadd.f32 %v211, %v279
  %v281 = vpop.f32.mrf.mxu0
  %282 = vmatprep.mubr.f32.mxu0 0.0
  %283 = vmatmul.mubr.f32.gmra.mxu0 %v183
  %v284 = vpop.f32.mrf.mxu0
  %v285 = vadd.f32 %v211, %v284
  %v286 = vpop.f32.mrf.mxu0
  %287 = vmatprep.mubr.f32.mxu0 0.0
  %288 = vmatmul.mubr.f32.gmra.mxu0 %v184
  %v289 = vpop.f32.mrf.mxu0
  %v290 = vadd.f32 %v211, %v289
  %v291 = vpop.f32.mrf.mxu0
  %292 = vmatprep.mubr.f32.mxu0 0.0
  %293 = vmatmul.mubr.f32.gmra.mxu0 %v185
  %v294 = vpop.f32.mrf.mxu0
  %v295 = vadd.f32 %v211, %v294
  %v296 = vpop.f32.mrf.mxu0
  %297 = vmatprep.mubr.f32.mxu0 0.0
  %298 = vmatmul.mubr.f32.gmra.mxu0 %v186
  %v299 = vpop.f32.mrf.mxu0
  %v300 = vadd.f32 %v211, %v299
  %v301 = vpop.f32.mrf.mxu0
  %302 = vmatprep.mubr.f32.mxu0 0.0
  %303 = vmatmul.mubr.f32.gmra.mxu0 %v187
  %v304 = vpop.f32.mrf.mxu0
  %v305 = vadd.f32 %v211, %v304
  %v306 = vpop.f32.mrf.mxu0
  %307 = vmatprep.mubr.f32.mxu0 0.0
  %308 = vmatmul.mubr.f32.gmra.mxu0 %v188
  %v309 = vpop.f32.mrf.mxu0
  %v310 = vadd.f32 %v211, %v309
  %v311 = vpop.f32.mrf.mxu0
  %312 = vmatprep.mubr.f32.mxu0 0.0
  %313 = vmatmul.mubr.f32.gmra.mxu0 %v189
  %v314 = vpop.f32.mrf.mxu0
  %v315 = vadd.f32 %v211, %v314
  %v316 = vpop.f32.mrf.mxu0
  %317 = vdwg.mxu0
  %318 = vst [vmem:[#allocation3] sm:$0xff] %v280
  %319 = vst [vmem:[#allocation3 + $0x8] sm:$0xff] %v285
  %320 = vst [vmem:[#allocation3 + $0x10] sm:$0xff] %v290
  %321 = vst [vmem:[#allocation3 + $0x18] sm:$0xff] %v295
  %322 = vst [vmem:[#allocation3 + $0x20] sm:$0xff] %v300
  %323 = vst [vmem:[#allocation3 + $0x28] sm:$0xff] %v305
  %324 = vst [vmem:[#allocation3 + $0x30] sm:$0xff] %v310
  %325 = vst [vmem:[#allocation3 + $0x38] sm:$0xff] %v315
  %v326 = vld [vmem:[%s4] sm:$0xff]
  %v327 = vld [vmem:[%s4 + $0x8] sm:$0xff]
  %v328 = vld [vmem:[%s4 + $0x10] sm:$0xff]
  %v329 = vld [vmem:[%s4 + $0x18] sm:$0xff]
  %v330 = vld [vmem:[%s4 + $0x20] sm:$0xff]
  %v331 = vld [vmem:[%s4 + $0x28] sm:$0xff]
  %v332 = vld [vmem:[%s4 + $0x30] sm:$0xff]
  %v333 = vld [vmem:[%s4 + $0x38] sm:$0xff]
  %v334 = vld [vmem:[%s4 + $0x40] sm:$0xff]
  %v335 = vld [vmem:[%s4 + $0x48] sm:$0xff]
  %v336 = vld [vmem:[%s4 + $0x50] sm:$0xff]
  %v337 = vld [vmem:[%s4 + $0x58] sm:$0xff]
  %v338 = vld [vmem:[%s4 + $0x60] sm:$0xff]
  %v339 = vld [vmem:[%s4 + $0x68] sm:$0xff]
  %v340 = vld [vmem:[%s4 + $0x70] sm:$0xff]
  %v341 = vld [vmem:[%s4 + $0x78] sm:$0xff]
  %v342 = vld [vmem:[%s7] sm:$0xff]
  %v343 = vld [vmem:[%s7 + $0x8] sm:$0xff]
  %v344 = vld [vmem:[%s7 + $0x10] sm:$0xff]
  %v345 = vld [vmem:[%s7 + $0x18] sm:$0xff]
  %v346 = vld [vmem:[%s7 + $0x20] sm:$0xff]
  %v347 = vld [vmem:[%s7 + $0x28] sm:$0xff]
  %v348 = vld [vmem:[%s7 + $0x30] sm:$0xff]
  %v349 = vld [vmem:[%s7 + $0x38] sm:$0xff]
  %v350 = vld [vmem:[%s7 + $0x40] sm:$0xff]
  %v351 = vld [vmem:[%s7 + $0x48] sm:$0xff]
  %v352 = vld [vmem:[%s7 + $0x50] sm:$0xff]
  %v353 = vld [vmem:[%s7 + $0x58] sm:$0xff]
  %v354 = vld [vmem:[%s7 + $0x60] sm:$0xff]
  %v355 = vld [vmem:[%s7 + $0x68] sm:$0xff]
  %v356 = vld [vmem:[%s7 + $0x70] sm:$0xff]
  %v357 = vld [vmem:[%s7 + $0x78] sm:$0xff]
  %v358 = vld [vmem:[%s2] sm:$0xff]
  %v359 = vld [vmem:[#allocation2] sm:$0xff]
  %360 = vmatprep.subr.mxu0 0.0
  %361 = vmatpush1.msra.mxu0 %v341
  %362 = vmatprep.subr.mxu0 0.0
  %363 = vmatpush1.msra.mxu0 %v340
  %364 = vmatprep.subr.mxu0 0.0
  %365 = vmatpush1.msra.mxu0 %v339
  %366 = vmatprep.subr.mxu0 0.0
  %367 = vmatpush1.msra.mxu0 %v338
  %368 = vmatprep.subr.mxu0 0.0
  %369 = vmatpush1.msra.mxu0 %v337
  %370 = vmatprep.subr.mxu0 0.0
  %371 = vmatpush1.msra.mxu0 %v336
  %372 = vmatprep.subr.mxu0 0.0
  %373 = vmatpush1.msra.mxu0 %v335
  %374 = vmatprep.subr.mxu0 0.0
  %375 = vmatpush1.msra.mxu0 %v334
  %376 = vmatprep.subr.mxu0 0.0
  %377 = vmatpush1.msra.mxu0 %v333
  %378 = vmatprep.subr.mxu0 0.0
  %379 = vmatpush1.msra.mxu0 %v332
  %380 = vmatprep.subr.mxu0 0.0
  %381 = vmatpush1.msra.mxu0 %v331
  %382 = vmatprep.subr.mxu0 0.0
  %383 = vmatpush1.msra.mxu0 %v330
  %384 = vmatprep.subr.mxu0 0.0
  %385 = vmatpush1.msra.mxu0 %v329
  %386 = vmatprep.subr.mxu0 0.0
  %387 = vmatpush1.msra.mxu0 %v328
  %388 = vmatprep.subr.mxu0 0.0
  %389 = vmatpush1.msra.mxu0 %v327
  %390 = vmatprep.subr.mxu0 0.0
  %391 = vmatpush1.msra.mxu0 %v326
  %392 = vmatprep.subr.mxu0 0.0
  %393 = vmatpush2.msra.mxu0 0.0
  %394 = vmatprep.subr.mxu0 0.0
  %395 = vmatpush2.msra.mxu0 0.0
  %396 = vmatprep.subr.mxu0 0.0
  %397 = vmatpush2.msra.mxu0 0.0
  %398 = vmatprep.subr.mxu0 0.0
  %399 = vmatpush2.msra.mxu0 0.0
  %400 = vmatprep.subr.mxu0 0.0
  %401 = vmatpush2.msra.mxu0 0.0
  %402 = vmatprep.subr.mxu0 0.0
  %403 = vmatpush2.msra.mxu0 0.0
  %404 = vmatprep.subr.mxu0 0.0
  %405 = vmatpush2.msra.mxu0 0.0
  %406 = vmatprep.subr.mxu0 0.0
  %407 = vmatpush2.msra.mxu0 0.0
  %408 = vmatprep.subr.mxu0 0.0
  %409 = vmatpush2.msra.mxu0 0.0
  %410 = vmatprep.subr.mxu0 0.0
  %411 = vmatpush2.msra.mxu0 0.0
  %412 = vmatprep.subr.mxu0 0.0
  %413 = vmatpush2.msra.mxu0 0.0
  %414 = vmatprep.subr.mxu0 0.0
  %415 = vmatpush2.msra.mxu0 0.0
  %416 = vmatprep.subr.mxu0 0.0
  %417 = vmatpush2.msra.mxu0 0.0
  %418 = vmatprep.subr.mxu0 0.0
  %419 = vmatpush2.msra.mxu0 0.0
  %420 = vmatprep.subr.mxu0 0.0
  %421 = vmatpush2.msra.mxu0 0.0
  %422 = vmatprep.subr.mxu0 0.0
  %423 = vmatpush2.msra.mxu0 0.0
  %424 = vmatprep.mubr.f32.mxu0 0.0
  %425 = vmatmul.mubr.f32.gmra.mxu0 %v358
  %v426 = vpop.f32.mrf.mxu0
  %v427 = vadd.f32 %v359, %v426
  %v428 = vpop.f32.mrf.mxu0
  %429 = vdwg.mxu0
  %v430 = vtanh.pop %v427
  %s431 = scalar_lea.vmem [#allocation2], 8
  %v432 = vld [vmem:[%s431] sm:$0xff]
  %433 = vmatprep.subr.mxu0 0.0
  %434 = vmatpush1.msra.mxu0 %v341
  %435 = vmatprep.subr.mxu0 0.0
  %436 = vmatpush1.msra.mxu0 %v340
  %437 = vmatprep.subr.mxu0 0.0
  %438 = vmatpush1.msra.mxu0 %v339
  %439 = vmatprep.subr.mxu0 0.0
  %440 = vmatpush1.msra.mxu0 %v338
  %441 = vmatprep.subr.mxu0 0.0
  %442 = vmatpush1.msra.mxu0 %v337
  %443 = vmatprep.subr.mxu0 0.0
  %444 = vmatpush1.msra.mxu0 %v336
  %445 = vmatprep.subr.mxu0 0.0
  %446 = vmatpush1.msra.mxu0 %v335
  %447 = vmatprep.subr.mxu0 0.0
  %448 = vmatpush1.msra.mxu0 %v334
  %449 = vmatprep.subr.mxu0 0.0
  %450 = vmatpush1.msra.mxu0 %v333
  %451 = vmatprep.subr.mxu0 0.0
  %452 = vmatpush1.msra.mxu0 %v332
  %453 = vmatprep.subr.mxu0 0.0
  %454 = vmatpush1.msra.mxu0 %v331
  %455 = vmatprep.subr.mxu0 0.0
  %456 = vmatpush1.msra.mxu0 %v330
  %457 = vmatprep.subr.mxu0 0.0
  %458 = vmatpush1.msra.mxu0 %v329
  %459 = vmatprep.subr.mxu0 0.0
  %460 = vmatpush1.msra.mxu0 %v328
  %461 = vmatprep.subr.mxu0 0.0
  %462 = vmatpush1.msra.mxu0 %v327
  %463 = vmatprep.subr.mxu0 0.0
  %464 = vmatpush1.msra.mxu0 %v326
  %465 = vmatprep.subr.mxu0 0.0
  %466 = vmatpush2.msra.mxu0 0.0
  %467 = vmatprep.subr.mxu0 0.0
  %468 = vmatpush2.msra.mxu0 0.0
  %469 = vmatprep.subr.mxu0 0.0
  %470 = vmatpush2.msra.mxu0 0.0
  %471 = vmatprep.subr.mxu0 0.0
  %472 = vmatpush2.msra.mxu0 0.0
  %473 = vmatprep.subr.mxu0 0.0
  %474 = vmatpush2.msra.mxu0 0.0
  %475 = vmatprep.subr.mxu0 0.0
  %476 = vmatpush2.msra.mxu0 0.0
  %477 = vmatprep.subr.mxu0 0.0
  %478 = vmatpush2.msra.mxu0 0.0
  %479 = vmatprep.subr.mxu0 0.0
  %480 = vmatpush2.msra.mxu0 0.0
  %481 = vmatprep.subr.mxu0 0.0
  %482 = vmatpush2.msra.mxu0 0.0
  %483 = vmatprep.subr.mxu0 0.0
  %484 = vmatpush2.msra.mxu0 0.0
  %485 = vmatprep.subr.mxu0 0.0
  %486 = vmatpush2.msra.mxu0 0.0
  %487 = vmatprep.subr.mxu0 0.0
  %488 = vmatpush2.msra.mxu0 0.0
  %489 = vmatprep.subr.mxu0 0.0
  %490 = vmatpush2.msra.mxu0 0.0
  %491 = vmatprep.subr.mxu0 0.0
  %492 = vmatpush2.msra.mxu0 0.0
  %493 = vmatprep.subr.mxu0 0.0
  %494 = vmatpush2.msra.mxu0 0.0
  %495 = vmatprep.subr.mxu0 0.0
  %496 = vmatpush2.msra.mxu0 0.0
  %497 = vmatprep.mubr.f32.mxu0 0.0
  %498 = vmatmul.mubr.f32.gmra.mxu0 %v430
  %v499 = vpop.f32.mrf.mxu0
  %v500 = vadd.f32 %v432, %v499
  %v501 = vpop.f32.mrf.mxu0
  %502 = vdwg.mxu0
  %v503 = vtanh.pop %v500
  %s504 = scalar_lea.vmem [#allocation2], 16
  %v505 = vld [vmem:[%s504] sm:$0xff]
  %506 = vmatprep.subr.mxu0 0.0
  %507 = vmatpush1.msra.mxu0 %v341
  %508 = vmatprep.subr.mxu0 0.0
  %509 = vmatpush1.msra.mxu0 %v340
  %510 = vmatprep.subr.mxu0 0.0
  %511 = vmatpush1.msra.mxu0 %v339
  %512 = vmatprep.subr.mxu0 0.0
  %513 = vmatpush1.msra.mxu0 %v338
  %514 = vmatprep.subr.mxu0 0.0
  %515 = vmatpush1.msra.mxu0 %v337
  %516 = vmatprep.subr.mxu0 0.0
  %517 = vmatpush1.msra.mxu0 %v336
  %518 = vmatprep.subr.mxu0 0.0
  %519 = vmatpush1.msra.mxu0 %v335
  %520 = vmatprep.subr.mxu0 0.0
  %521 = vmatpush1.msra.mxu0 %v334
  %522 = vmatprep.subr.mxu0 0.0
  %523 = vmatpush1.msra.mxu0 %v333
  %524 = vmatprep.subr.mxu0 0.0
  %525 = vmatpush1.msra.mxu0 %v332
  %526 = vmatprep.subr.mxu0 0.0
  %527 = vmatpush1.msra.mxu0 %v331
  %528 = vmatprep.subr.mxu0 0.0
  %529 = vmatpush1.msra.mxu0 %v330
  %530 = vmatprep.subr.mxu0 0.0
  %531 = vmatpush1.msra.mxu0 %v329
  %532 = vmatprep.subr.mxu0 0.0
  %533 = vmatpush1.msra.mxu0 %v328
  %534 = vmatprep.subr.mxu0 0.0
  %535 = vmatpush1.msra.mxu0 %v327
  %536 = vmatprep.subr.mxu0 0.0
  %537 = vmatpush1.msra.mxu0 %v326
  %538 = vmatprep.subr.mxu0 0.0
  %539 = vmatpush2.msra.mxu0 0.0
  %540 = vmatprep.subr.mxu0 0.0
  %541 = vmatpush2.msra.mxu0 0.0
  %542 = vmatprep.subr.mxu0 0.0
  %543 = vmatpush2.msra.mxu0 0.0
  %544 = vmatprep.subr.mxu0 0.0
  %545 = vmatpush2.msra.mxu0 0.0
  %546 = vmatprep.subr.mxu0 0.0
  %547 = vmatpush2.msra.mxu0 0.0
  %548 = vmatprep.subr.mxu0 0.0
  %549 = vmatpush2.msra.mxu0 0.0
  %550 = vmatprep.subr.mxu0 0.0
  %551 = vmatpush2.msra.mxu0 0.0
  %552 = vmatprep.subr.mxu0 0.0
  %553 = vmatpush2.msra.mxu0 0.0
  %554 = vmatprep.subr.mxu0 0.0
  %555 = vmatpush2.msra.mxu0 0.0
  %556 = vmatprep.subr.mxu0 0.0
  %557 = vmatpush2.msra.mxu0 0.0
  %558 = vmatprep.subr.mxu0 0.0
  %559 = vmatpush2.msra.mxu0 0.0
  %560 = vmatprep.subr.mxu0 0.0
  %561 = vmatpush2.msra.mxu0 0.0
  %562 = vmatprep.subr.mxu0 0.0
  %563 = vmatpush2.msra.mxu0 0.0
  %564 = vmatprep.subr.mxu0 0.0
  %565 = vmatpush2.msra.mxu0 0.0
  %566 = vmatprep.subr.mxu0 0.0
  %567 = vmatpush2.msra.mxu0 0.0
  %568 = vmatprep.subr.mxu0 0.0
  %569 = vmatpush2.msra.mxu0 0.0
  %570 = vmatprep.mubr.f32.mxu0 0.0
  %571 = vmatmul.mubr.f32.gmra.mxu0 %v503
  %v572 = vpop.f32.mrf.mxu0
  %v573 = vadd.f32 %v505, %v572
  %v574 = vpop.f32.mrf.mxu0
  %575 = vdwg.mxu0
  %v576 = vtanh.pop %v573
  %s577 = scalar_lea.vmem [#allocation2], 24
  %v578 = vld [vmem:[%s577] sm:$0xff]
  %579 = vmatprep.subr.mxu0 0.0
  %580 = vmatpush1.msra.mxu0 %v341
  %581 = vmatprep.subr.mxu0 0.0
  %582 = vmatpush1.msra.mxu0 %v340
  %583 = vmatprep.subr.mxu0 0.0
  %584 = vmatpush1.msra.mxu0 %v339
  %585 = vmatprep.subr.mxu0 0.0
  %586 = vmatpush1.msra.mxu0 %v338
  %587 = vmatprep.subr.mxu0 0.0
  %588 = vmatpush1.msra.mxu0 %v337
  %589 = vmatprep.subr.mxu0 0.0
  %590 = vmatpush1.msra.mxu0 %v336
  %591 = vmatprep.subr.mxu0 0.0
  %592 = vmatpush1.msra.mxu0 %v335
  %593 = vmatprep.subr.mxu0 0.0
  %594 = vmatpush1.msra.mxu0 %v334
  %595 = vmatprep.subr.mxu0 0.0
  %596 = vmatpush1.msra.mxu0 %v333
  %597 = vmatprep.subr.mxu0 0.0
  %598 = vmatpush1.msra.mxu0 %v332
  %599 = vmatprep.subr.mxu0 0.0
  %600 = vmatpush1.msra.mxu0 %v331
  %601 = vmatprep.subr.mxu0 0.0
  %602 = vmatpush1.msra.mxu0 %v330
  %603 = vmatprep.subr.mxu0 0.0
  %604 = vmatpush1.msra.mxu0 %v329
  %605 = vmatprep.subr.mxu0 0.0
  %606 = vmatpush1.msra.mxu0 %v328
  %607 = vmatprep.subr.mxu0 0.0
  %608 = vmatpush1.msra.mxu0 %v327
  %609 = vmatprep.subr.mxu0 0.0
  %610 = vmatpush1.msra.mxu0 %v326
  %611 = vmatprep.subr.mxu0 0.0
  %612 = vmatpush2.msra.mxu0 0.0
  %613 = vmatprep.subr.mxu0 0.0
  %614 = vmatpush2.msra.mxu0 0.0
  %615 = vmatprep.subr.mxu0 0.0
  %616 = vmatpush2.msra.mxu0 0.0
  %617 = vmatprep.subr.mxu0 0.0
  %618 = vmatpush2.msra.mxu0 0.0
  %619 = vmatprep.subr.mxu0 0.0
  %620 = vmatpush2.msra.mxu0 0.0
  %621 = vmatprep.subr.mxu0 0.0
  %622 = vmatpush2.msra.mxu0 0.0
  %623 = vmatprep.subr.mxu0 0.0
  %624 = vmatpush2.msra.mxu0 0.0
  %625 = vmatprep.subr.mxu0 0.0
  %626 = vmatpush2.msra.mxu0 0.0
  %627 = vmatprep.subr.mxu0 0.0
  %628 = vmatpush2.msra.mxu0 0.0
  %629 = vmatprep.subr.mxu0 0.0
  %630 = vmatpush2.msra.mxu0 0.0
  %631 = vmatprep.subr.mxu0 0.0
  %632 = vmatpush2.msra.mxu0 0.0
  %633 = vmatprep.subr.mxu0 0.0
  %634 = vmatpush2.msra.mxu0 0.0
  %635 = vmatprep.subr.mxu0 0.0
  %636 = vmatpush2.msra.mxu0 0.0
  %637 = vmatprep.subr.mxu0 0.0
  %638 = vmatpush2.msra.mxu0 0.0
  %639 = vmatprep.subr.mxu0 0.0
  %640 = vmatpush2.msra.mxu0 0.0
  %641 = vmatprep.subr.mxu0 0.0
  %642 = vmatpush2.msra.mxu0 0.0
  %643 = vmatprep.mubr.f32.mxu0 0.0
  %644 = vmatmul.mubr.f32.gmra.mxu0 %v576
  %v645 = vpop.f32.mrf.mxu0
  %v646 = vadd.f32 %v578, %v645
  %v647 = vpop.f32.mrf.mxu0
  %648 = vdwg.mxu0
  %v649 = vtanh.pop %v646
  %s650 = scalar_lea.vmem [#allocation2], 32
  %v651 = vld [vmem:[%s650] sm:$0xff]
  %652 = vmatprep.subr.mxu0 0.0
  %653 = vmatpush1.msra.mxu0 %v341
  %654 = vmatprep.subr.mxu0 0.0
  %655 = vmatpush1.msra.mxu0 %v340
  %656 = vmatprep.subr.mxu0 0.0
  %657 = vmatpush1.msra.mxu0 %v339
  %658 = vmatprep.subr.mxu0 0.0
  %659 = vmatpush1.msra.mxu0 %v338
  %660 = vmatprep.subr.mxu0 0.0
  %661 = vmatpush1.msra.mxu0 %v337
  %662 = vmatprep.subr.mxu0 0.0
  %663 = vmatpush1.msra.mxu0 %v336
  %664 = vmatprep.subr.mxu0 0.0
  %665 = vmatpush1.msra.mxu0 %v335
  %666 = vmatprep.subr.mxu0 0.0
  %667 = vmatpush1.msra.mxu0 %v334
  %668 = vmatprep.subr.mxu0 0.0
  %669 = vmatpush1.msra.mxu0 %v333
  %670 = vmatprep.subr.mxu0 0.0
  %671 = vmatpush1.msra.mxu0 %v332
  %672 = vmatprep.subr.mxu0 0.0
  %673 = vmatpush1.msra.mxu0 %v331
  %674 = vmatprep.subr.mxu0 0.0
  %675 = vmatpush1.msra.mxu0 %v330
  %676 = vmatprep.subr.mxu0 0.0
  %677 = vmatpush1.msra.mxu0 %v329
  %678 = vmatprep.subr.mxu0 0.0
  %679 = vmatpush1.msra.mxu0 %v328
  %680 = vmatprep.subr.mxu0 0.0
  %681 = vmatpush1.msra.mxu0 %v327
  %682 = vmatprep.subr.mxu0 0.0
  %683 = vmatpush1.msra.mxu0 %v326
  %684 = vmatprep.subr.mxu0 0.0
  %685 = vmatpush2.msra.mxu0 0.0
  %686 = vmatprep.subr.mxu0 0.0
  %687 = vmatpush2.msra.mxu0 0.0
  %688 = vmatprep.subr.mxu0 0.0
  %689 = vmatpush2.msra.mxu0 0.0
  %690 = vmatprep.subr.mxu0 0.0
  %691 = vmatpush2.msra.mxu0 0.0
  %692 = vmatprep.subr.mxu0 0.0
  %693 = vmatpush2.msra.mxu0 0.0
  %694 = vmatprep.subr.mxu0 0.0
  %695 = vmatpush2.msra.mxu0 0.0
  %696 = vmatprep.subr.mxu0 0.0
  %697 = vmatpush2.msra.mxu0 0.0
  %698 = vmatprep.subr.mxu0 0.0
  %699 = vmatpush2.msra.mxu0 0.0
  %700 = vmatprep.subr.mxu0 0.0
  %701 = vmatpush2.msra.mxu0 0.0
  %702 = vmatprep.subr.mxu0 0.0
  %703 = vmatpush2.msra.mxu0 0.0
  %704 = vmatprep.subr.mxu0 0.0
  %705 = vmatpush2.msra.mxu0 0.0
  %706 = vmatprep.subr.mxu0 0.0
  %707 = vmatpush2.msra.mxu0 0.0
  %708 = vmatprep.subr.mxu0 0.0
  %709 = vmatpush2.msra.mxu0 0.0
  %710 = vmatprep.subr.mxu0 0.0
  %711 = vmatpush2.msra.mxu0 0.0
  %712 = vmatprep.subr.mxu0 0.0
  %713 = vmatpush2.msra.mxu0 0.0
  %714 = vmatprep.subr.mxu0 0.0
  %715 = vmatpush2.msra.mxu0 0.0
  %716 = vmatprep.mubr.f32.mxu0 0.0
  %717 = vmatmul.mubr.f32.gmra.mxu0 %v649
  %v718 = vpop.f32.mrf.mxu0
  %v719 = vadd.f32 %v651, %v718
  %v720 = vpop.f32.mrf.mxu0
  %721 = vdwg.mxu0
  %v722 = vtanh.pop %v719
  %s723 = scalar_lea.vmem [#allocation2], 40
  %v724 = vld [vmem:[%s723] sm:$0xff]
  %725 = vmatprep.subr.mxu0 0.0
  %726 = vmatpush1.msra.mxu0 %v341
  %727 = vmatprep.subr.mxu0 0.0
  %728 = vmatpush1.msra.mxu0 %v340
  %729 = vmatprep.subr.mxu0 0.0
  %730 = vmatpush1.msra.mxu0 %v339
  %731 = vmatprep.subr.mxu0 0.0
  %732 = vmatpush1.msra.mxu0 %v338
  %733 = vmatprep.subr.mxu0 0.0
  %734 = vmatpush1.msra.mxu0 %v337
  %735 = vmatprep.subr.mxu0 0.0
  %736 = vmatpush1.msra.mxu0 %v336
  %737 = vmatprep.subr.mxu0 0.0
  %738 = vmatpush1.msra.mxu0 %v335
  %739 = vmatprep.subr.mxu0 0.0
  %740 = vmatpush1.msra.mxu0 %v334
  %741 = vmatprep.subr.mxu0 0.0
  %742 = vmatpush1.msra.mxu0 %v333
  %743 = vmatprep.subr.mxu0 0.0
  %744 = vmatpush1.msra.mxu0 %v332
  %745 = vmatprep.subr.mxu0 0.0
  %746 = vmatpush1.msra.mxu0 %v331
  %747 = vmatprep.subr.mxu0 0.0
  %748 = vmatpush1.msra.mxu0 %v330
  %749 = vmatprep.subr.mxu0 0.0
  %750 = vmatpush1.msra.mxu0 %v329
  %751 = vmatprep.subr.mxu0 0.0
  %752 = vmatpush1.msra.mxu0 %v328
  %753 = vmatprep.subr.mxu0 0.0
  %754 = vmatpush1.msra.mxu0 %v327
  %755 = vmatprep.subr.mxu0 0.0
  %756 = vmatpush1.msra.mxu0 %v326
  %757 = vmatprep.subr.mxu0 0.0
  %758 = vmatpush2.msra.mxu0 0.0
  %759 = vmatprep.subr.mxu0 0.0
  %760 = vmatpush2.msra.mxu0 0.0
  %761 = vmatprep.subr.mxu0 0.0
  %762 = vmatpush2.msra.mxu0 0.0
  %763 = vmatprep.subr.mxu0 0.0
  %764 = vmatpush2.msra.mxu0 0.0
  %765 = vmatprep.subr.mxu0 0.0
  %766 = vmatpush2.msra.mxu0 0.0
  %767 = vmatprep.subr.mxu0 0.0
  %768 = vmatpush2.msra.mxu0 0.0
  %769 = vmatprep.subr.mxu0 0.0
  %770 = vmatpush2.msra.mxu0 0.0
  %771 = vmatprep.subr.mxu0 0.0
  %772 = vmatpush2.msra.mxu0 0.0
  %773 = vmatprep.subr.mxu0 0.0
  %774 = vmatpush2.msra.mxu0 0.0
  %775 = vmatprep.subr.mxu0 0.0
  %776 = vmatpush2.msra.mxu0 0.0
  %777 = vmatprep.subr.mxu0 0.0
  %778 = vmatpush2.msra.mxu0 0.0
  %779 = vmatprep.subr.mxu0 0.0
  %780 = vmatpush2.msra.mxu0 0.0
  %781 = vmatprep.subr.mxu0 0.0
  %782 = vmatpush2.msra.mxu0 0.0
  %783 = vmatprep.subr.mxu0 0.0
  %784 = vmatpush2.msra.mxu0 0.0
  %785 = vmatprep.subr.mxu0 0.0
  %786 = vmatpush2.msra.mxu0 0.0
  %787 = vmatprep.subr.mxu0 0.0
  %788 = vmatpush2.msra.mxu0 0.0
  %789 = vmatprep.mubr.f32.mxu0 0.0
  %790 = vmatmul.mubr.f32.gmra.mxu0 %v722
  %v791 = vpop.f32.mrf.mxu0
  %v792 = vadd.f32 %v724, %v791
  %v793 = vpop.f32.mrf.mxu0
  %794 = vdwg.mxu0
  %v795 = vtanh.pop %v792
  %s796 = scalar_lea.vmem [#allocation2], 48
  %v797 = vld [vmem:[%s796] sm:$0xff]
  %798 = vmatprep.subr.mxu0 0.0
  %799 = vmatpush1.msra.mxu0 %v341
  %800 = vmatprep.subr.mxu0 0.0
  %801 = vmatpush1.msra.mxu0 %v340
  %802 = vmatprep.subr.mxu0 0.0
  %803 = vmatpush1.msra.mxu0 %v339
  %804 = vmatprep.subr.mxu0 0.0
  %805 = vmatpush1.msra.mxu0 %v338
  %806 = vmatprep.subr.mxu0 0.0
  %807 = vmatpush1.msra.mxu0 %v337
  %808 = vmatprep.subr.mxu0 0.0
  %809 = vmatpush1.msra.mxu0 %v336
  %810 = vmatprep.subr.mxu0 0.0
  %811 = vmatpush1.msra.mxu0 %v335
  %812 = vmatprep.subr.mxu0 0.0
  %813 = vmatpush1.msra.mxu0 %v334
  %814 = vmatprep.subr.mxu0 0.0
  %815 = vmatpush1.msra.mxu0 %v333
  %816 = vmatprep.subr.mxu0 0.0
  %817 = vmatpush1.msra.mxu0 %v332
  %818 = vmatprep.subr.mxu0 0.0
  %819 = vmatpush1.msra.mxu0 %v331
  %820 = vmatprep.subr.mxu0 0.0
  %821 = vmatpush1.msra.mxu0 %v330
  %822 = vmatprep.subr.mxu0 0.0
  %823 = vmatpush1.msra.mxu0 %v329
  %824 = vmatprep.subr.mxu0 0.0
  %825 = vmatpush1.msra.mxu0 %v328
  %826 = vmatprep.subr.mxu0 0.0
  %827 = vmatpush1.msra.mxu0 %v327
  %828 = vmatprep.subr.mxu0 0.0
  %829 = vmatpush1.msra.mxu0 %v326
  %830 = vmatprep.subr.mxu0 0.0
  %831 = vmatpush2.msra.mxu0 0.0
  %832 = vmatprep.subr.mxu0 0.0
  %833 = vmatpush2.msra.mxu0 0.0
  %834 = vmatprep.subr.mxu0 0.0
  %835 = vmatpush2.msra.mxu0 0.0
  %836 = vmatprep.subr.mxu0 0.0
  %837 = vmatpush2.msra.mxu0 0.0
  %838 = vmatprep.subr.mxu0 0.0
  %839 = vmatpush2.msra.mxu0 0.0
  %840 = vmatprep.subr.mxu0 0.0
  %841 = vmatpush2.msra.mxu0 0.0
  %842 = vmatprep.subr.mxu0 0.0
  %843 = vmatpush2.msra.mxu0 0.0
  %844 = vmatprep.subr.mxu0 0.0
  %845 = vmatpush2.msra.mxu0 0.0
  %846 = vmatprep.subr.mxu0 0.0
  %847 = vmatpush2.msra.mxu0 0.0
  %848 = vmatprep.subr.mxu0 0.0
  %849 = vmatpush2.msra.mxu0 0.0
  %850 = vmatprep.subr.mxu0 0.0
  %851 = vmatpush2.msra.mxu0 0.0
  %852 = vmatprep.subr.mxu0 0.0
  %853 = vmatpush2.msra.mxu0 0.0
  %854 = vmatprep.subr.mxu0 0.0
  %855 = vmatpush2.msra.mxu0 0.0
  %856 = vmatprep.subr.mxu0 0.0
  %857 = vmatpush2.msra.mxu0 0.0
  %858 = vmatprep.subr.mxu0 0.0
  %859 = vmatpush2.msra.mxu0 0.0
  %860 = vmatprep.subr.mxu0 0.0
  %861 = vmatpush2.msra.mxu0 0.0
  %862 = vmatprep.mubr.f32.mxu0 0.0
  %863 = vmatmul.mubr.f32.gmra.mxu0 %v795
  %v864 = vpop.f32.mrf.mxu0
  %v865 = vadd.f32 %v797, %v864
  %v866 = vpop.f32.mrf.mxu0
  %867 = vdwg.mxu0
  %v868 = vtanh.pop %v865
  %s869 = scalar_lea.vmem [#allocation2], 56
  %v870 = vld [vmem:[%s869] sm:$0xff]
  %871 = vmatprep.subr.mxu0 0.0
  %872 = vmatpush1.msra.mxu0 %v341
  %873 = vmatprep.subr.mxu0 0.0
  %874 = vmatpush1.msra.mxu0 %v340
  %875 = vmatprep.subr.mxu0 0.0
  %876 = vmatpush1.msra.mxu0 %v339
  %877 = vmatprep.subr.mxu0 0.0
  %878 = vmatpush1.msra.mxu0 %v338
  %879 = vmatprep.subr.mxu0 0.0
  %880 = vmatpush1.msra.mxu0 %v337
  %881 = vmatprep.subr.mxu0 0.0
  %882 = vmatpush1.msra.mxu0 %v336
  %883 = vmatprep.subr.mxu0 0.0
  %884 = vmatpush1.msra.mxu0 %v335
  %885 = vmatprep.subr.mxu0 0.0
  %886 = vmatpush1.msra.mxu0 %v334
  %887 = vmatprep.subr.mxu0 0.0
  %888 = vmatpush1.msra.mxu0 %v333
  %889 = vmatprep.subr.mxu0 0.0
  %890 = vmatpush1.msra.mxu0 %v332
  %891 = vmatprep.subr.mxu0 0.0
  %892 = vmatpush1.msra.mxu0 %v331
  %893 = vmatprep.subr.mxu0 0.0
  %894 = vmatpush1.msra.mxu0 %v330
  %895 = vmatprep.subr.mxu0 0.0
  %896 = vmatpush1.msra.mxu0 %v329
  %897 = vmatprep.subr.mxu0 0.0
  %898 = vmatpush1.msra.mxu0 %v328
  %899 = vmatprep.subr.mxu0 0.0
  %900 = vmatpush1.msra.mxu0 %v327
  %901 = vmatprep.subr.mxu0 0.0
  %902 = vmatpush1.msra.mxu0 %v326
  %903 = vmatprep.subr.mxu0 0.0
  %904 = vmatpush2.msra.mxu0 0.0
  %905 = vmatprep.subr.mxu0 0.0
  %906 = vmatpush2.msra.mxu0 0.0
  %907 = vmatprep.subr.mxu0 0.0
  %908 = vmatpush2.msra.mxu0 0.0
  %909 = vmatprep.subr.mxu0 0.0
  %910 = vmatpush2.msra.mxu0 0.0
  %911 = vmatprep.subr.mxu0 0.0
  %912 = vmatpush2.msra.mxu0 0.0
  %913 = vmatprep.subr.mxu0 0.0
  %914 = vmatpush2.msra.mxu0 0.0
  %915 = vmatprep.subr.mxu0 0.0
  %916 = vmatpush2.msra.mxu0 0.0
  %917 = vmatprep.subr.mxu0 0.0
  %918 = vmatpush2.msra.mxu0 0.0
  %919 = vmatprep.subr.mxu0 0.0
  %920 = vmatpush2.msra.mxu0 0.0
  %921 = vmatprep.subr.mxu0 0.0
  %922 = vmatpush2.msra.mxu0 0.0
  %923 = vmatprep.subr.mxu0 0.0
  %924 = vmatpush2.msra.mxu0 0.0
  %925 = vmatprep.subr.mxu0 0.0
  %926 = vmatpush2.msra.mxu0 0.0
  %927 = vmatprep.subr.mxu0 0.0
  %928 = vmatpush2.msra.mxu0 0.0
  %929 = vmatprep.subr.mxu0 0.0
  %930 = vmatpush2.msra.mxu0 0.0
  %931 = vmatprep.subr.mxu0 0.0
  %932 = vmatpush2.msra.mxu0 0.0
  %933 = vmatprep.subr.mxu0 0.0
  %934 = vmatpush2.msra.mxu0 0.0
  %935 = vmatprep.mubr.f32.mxu0 0.0
  %936 = vmatmul.mubr.f32.gmra.mxu0 %v868
  %v937 = vpop.f32.mrf.mxu0
  %v938 = vadd.f32 %v870, %v937
  %v939 = vpop.f32.mrf.mxu0
  %940 = vdwg.mxu0
  %v941 = vtanh.pop %v938
  %v942 = vld [vmem:[#allocation3] sm:$0xff]
  %943 = vmatprep.subr.mxu0 0.0
  %944 = vmatpush1.msra.mxu0 %v357
  %945 = vmatprep.subr.mxu0 0.0
  %946 = vmatpush1.msra.mxu0 %v356
  %947 = vmatprep.subr.mxu0 0.0
  %948 = vmatpush1.msra.mxu0 %v355
  %949 = vmatprep.subr.mxu0 0.0
  %950 = vmatpush1.msra.mxu0 %v354
  %951 = vmatprep.subr.mxu0 0.0
  %952 = vmatpush1.msra.mxu0 %v353
  %953 = vmatprep.subr.mxu0 0.0
  %954 = vmatpush1.msra.mxu0 %v352
  %955 = vmatprep.subr.mxu0 0.0
  %956 = vmatpush1.msra.mxu0 %v351
  %957 = vmatprep.subr.mxu0 0.0
  %958 = vmatpush1.msra.mxu0 %v350
  %959 = vmatprep.subr.mxu0 0.0
  %960 = vmatpush1.msra.mxu0 %v349
  %961 = vmatprep.subr.mxu0 0.0
  %962 = vmatpush1.msra.mxu0 %v348
  %963 = vmatprep.subr.mxu0 0.0
  %964 = vmatpush1.msra.mxu0 %v347
  %965 = vmatprep.subr.mxu0 0.0
  %966 = vmatpush1.msra.mxu0 %v346
  %967 = vmatprep.subr.mxu0 0.0
  %968 = vmatpush1.msra.mxu0 %v345
  %969 = vmatprep.subr.mxu0 0.0
  %970 = vmatpush1.msra.mxu0 %v344
  %971 = vmatprep.subr.mxu0 0.0
  %972 = vmatpush1.msra.mxu0 %v343
  %973 = vmatprep.subr.mxu0 0.0
  %974 = vmatpush1.msra.mxu0 %v342
  %975 = vmatprep.subr.mxu0 0.0
  %976 = vmatpush2.msra.mxu0 0.0
  %977 = vmatprep.subr.mxu0 0.0
  %978 = vmatpush2.msra.mxu0 0.0
  %979 = vmatprep.subr.mxu0 0.0
  %980 = vmatpush2.msra.mxu0 0.0
  %981 = vmatprep.subr.mxu0 0.0
  %982 = vmatpush2.msra.mxu0 0.0
  %983 = vmatprep.subr.mxu0 0.0
  %984 = vmatpush2.msra.mxu0 0.0
  %985 = vmatprep.subr.mxu0 0.0
  %986 = vmatpush2.msra.mxu0 0.0
  %987 = vmatprep.subr.mxu0 0.0
  %988 = vmatpush2.msra.mxu0 0.0
  %989 = vmatprep.subr.mxu0 0.0
  %990 = vmatpush2.msra.mxu0 0.0
  %991 = vmatprep.subr.mxu0 0.0
  %992 = vmatpush2.msra.mxu0 0.0
  %993 = vmatprep.subr.mxu0 0.0
  %994 = vmatpush2.msra.mxu0 0.0
  %995 = vmatprep.subr.mxu0 0.0
  %996 = vmatpush2.msra.mxu0 0.0
  %997 = vmatprep.subr.mxu0 0.0
  %998 = vmatpush2.msra.mxu0 0.0
  %999 = vmatprep.subr.mxu0 0.0
  %1000 = vmatpush2.msra.mxu0 0.0
  %1001 = vmatprep.subr.mxu0 0.0
  %1002 = vmatpush2.msra.mxu0 0.0
  %1003 = vmatprep.subr.mxu0 0.0
  %1004 = vmatpush2.msra.mxu0 0.0
  %1005 = vmatprep.subr.mxu0 0.0
  %1006 = vmatpush2.msra.mxu0 0.0
  %1007 = vmatprep.mubr.f32.mxu0 0.0
  %1008 = vmatmul.mubr.f32.gmra.mxu0 %v941
  %v1009 = vpop.f32.mrf.mxu0
  %v1010 = vadd.f32 %v942, %v1009
  %v1011 = vpop.f32.mrf.mxu0
  %1012 = vdwg.mxu0
  %v1013 = vtanh.pop %v1010
  %1014 = vst [vmem:[#allocation4] sm:$0xff] %v1013
  %s1015 = scalar_lea.vmem [#allocation3], 8
  %v1016 = vld [vmem:[%s1015] sm:$0xff]
  %1017 = vmatprep.subr.mxu0 0.0
  %1018 = vmatpush1.msra.mxu0 %v357
  %1019 = vmatprep.subr.mxu0 0.0
  %1020 = vmatpush1.msra.mxu0 %v356
  %1021 = vmatprep.subr.mxu0 0.0
  %1022 = vmatpush1.msra.mxu0 %v355
  %1023 = vmatprep.subr.mxu0 0.0
  %1024 = vmatpush1.msra.mxu0 %v354
  %1025 = vmatprep.subr.mxu0 0.0
  %1026 = vmatpush1.msra.mxu0 %v353
  %1027 = vmatprep.subr.mxu0 0.0
  %1028 = vmatpush1.msra.mxu0 %v352
  %1029 = vmatprep.subr.mxu0 0.0
  %1030 = vmatpush1.msra.mxu0 %v351
  %1031 = vmatprep.subr.mxu0 0.0
  %1032 = vmatpush1.msra.mxu0 %v350
  %1033 = vmatprep.subr.mxu0 0.0
  %1034 = vmatpush1.msra.mxu0 %v349
  %1035 = vmatprep.subr.mxu0 0.0
  %1036 = vmatpush1.msra.mxu0 %v348
  %1037 = vmatprep.subr.mxu0 0.0
  %1038 = vmatpush1.msra.mxu0 %v347
  %1039 = vmatprep.subr.mxu0 0.0
  %1040 = vmatpush1.msra.mxu0 %v346
  %1041 = vmatprep.subr.mxu0 0.0
  %1042 = vmatpush1.msra.mxu0 %v345
  %1043 = vmatprep.subr.mxu0 0.0
  %1044 = vmatpush1.msra.mxu0 %v344
  %1045 = vmatprep.subr.mxu0 0.0
  %1046 = vmatpush1.msra.mxu0 %v343
  %1047 = vmatprep.subr.mxu0 0.0
  %1048 = vmatpush1.msra.mxu0 %v342
  %1049 = vmatprep.subr.mxu0 0.0
  %1050 = vmatpush2.msra.mxu0 0.0
  %1051 = vmatprep.subr.mxu0 0.0
  %1052 = vmatpush2.msra.mxu0 0.0
  %1053 = vmatprep.subr.mxu0 0.0
  %1054 = vmatpush2.msra.mxu0 0.0
  %1055 = vmatprep.subr.mxu0 0.0
  %1056 = vmatpush2.msra.mxu0 0.0
  %1057 = vmatprep.subr.mxu0 0.0
  %1058 = vmatpush2.msra.mxu0 0.0
  %1059 = vmatprep.subr.mxu0 0.0
  %1060 = vmatpush2.msra.mxu0 0.0
  %1061 = vmatprep.subr.mxu0 0.0
  %1062 = vmatpush2.msra.mxu0 0.0
  %1063 = vmatprep.subr.mxu0 0.0
  %1064 = vmatpush2.msra.mxu0 0.0
  %1065 = vmatprep.subr.mxu0 0.0
  %1066 = vmatpush2.msra.mxu0 0.0
  %1067 = vmatprep.subr.mxu0 0.0
  %1068 = vmatpush2.msra.mxu0 0.0
  %1069 = vmatprep.subr.mxu0 0.0
  %1070 = vmatpush2.msra.mxu0 0.0
  %1071 = vmatprep.subr.mxu0 0.0
  %1072 = vmatpush2.msra.mxu0 0.0
  %1073 = vmatprep.subr.mxu0 0.0
  %1074 = vmatpush2.msra.mxu0 0.0
  %1075 = vmatprep.subr.mxu0 0.0
  %1076 = vmatpush2.msra.mxu0 0.0
  %1077 = vmatprep.subr.mxu0 0.0
  %1078 = vmatpush2.msra.mxu0 0.0
  %1079 = vmatprep.subr.mxu0 0.0
  %1080 = vmatpush2.msra.mxu0 0.0
  %1081 = vmatprep.mubr.f32.mxu0 0.0
  %1082 = vmatmul.mubr.f32.gmra.mxu0 %v1013
  %v1083 = vpop.f32.mrf.mxu0
  %v1084 = vadd.f32 %v1016, %v1083
  %v1085 = vpop.f32.mrf.mxu0
  %1086 = vdwg.mxu0
  %v1087 = vtanh.pop %v1084
  %s1088 = scalar_lea.vmem [#allocation4], 8
  %1089 = vst [vmem:[%s1088] sm:$0xff] %v1087
  %s1090 = scalar_lea.vmem [#allocation3], 16
  %v1091 = vld [vmem:[%s1090] sm:$0xff]
  %1092 = vmatprep.subr.mxu0 0.0
  %1093 = vmatpush1.msra.mxu0 %v357
  %1094 = vmatprep.subr.mxu0 0.0
  %1095 = vmatpush1.msra.mxu0 %v356
  %1096 = vmatprep.subr.mxu0 0.0
  %1097 = vmatpush1.msra.mxu0 %v355
  %1098 = vmatprep.subr.mxu0 0.0
  %1099 = vmatpush1.msra.mxu0 %v354
  %1100 = vmatprep.subr.mxu0 0.0
  %1101 = vmatpush1.msra.mxu0 %v353
  %1102 = vmatprep.subr.mxu0 0.0
  %1103 = vmatpush1.msra.mxu0 %v352
  %1104 = vmatprep.subr.mxu0 0.0
  %1105 = vmatpush1.msra.mxu0 %v351
  %1106 = vmatprep.subr.mxu0 0.0
  %1107 = vmatpush1.msra.mxu0 %v350
  %1108 = vmatprep.subr.mxu0 0.0
  %1109 = vmatpush1.msra.mxu0 %v349
  %1110 = vmatprep.subr.mxu0 0.0
  %1111 = vmatpush1.msra.mxu0 %v348
  %1112 = vmatprep.subr.mxu0 0.0
  %1113 = vmatpush1.msra.mxu0 %v347
  %1114 = vmatprep.subr.mxu0 0.0
  %1115 = vmatpush1.msra.mxu0 %v346
  %1116 = vmatprep.subr.mxu0 0.0
  %1117 = vmatpush1.msra.mxu0 %v345
  %1118 = vmatprep.subr.mxu0 0.0
  %1119 = vmatpush1.msra.mxu0 %v344
  %1120 = vmatprep.subr.mxu0 0.0
  %1121 = vmatpush1.msra.mxu0 %v343
  %1122 = vmatprep.subr.mxu0 0.0
  %1123 = vmatpush1.msra.mxu0 %v342
  %1124 = vmatprep.subr.mxu0 0.0
  %1125 = vmatpush2.msra.mxu0 0.0
  %1126 = vmatprep.subr.mxu0 0.0
  %1127 = vmatpush2.msra.mxu0 0.0
  %1128 = vmatprep.subr.mxu0 0.0
  %1129 = vmatpush2.msra.mxu0 0.0
  %1130 = vmatprep.subr.mxu0 0.0
  %1131 = vmatpush2.msra.mxu0 0.0
  %1132 = vmatprep.subr.mxu0 0.0
  %1133 = vmatpush2.msra.mxu0 0.0
  %1134 = vmatprep.subr.mxu0 0.0
  %1135 = vmatpush2.msra.mxu0 0.0
  %1136 = vmatprep.subr.mxu0 0.0
  %1137 = vmatpush2.msra.mxu0 0.0
  %1138 = vmatprep.subr.mxu0 0.0
  %1139 = vmatpush2.msra.mxu0 0.0
  %1140 = vmatprep.subr.mxu0 0.0
  %1141 = vmatpush2.msra.mxu0 0.0
  %1142 = vmatprep.subr.mxu0 0.0
  %1143 = vmatpush2.msra.mxu0 0.0
  %1144 = vmatprep.subr.mxu0 0.0
  %1145 = vmatpush2.msra.mxu0 0.0
  %1146 = vmatprep.subr.mxu0 0.0
  %1147 = vmatpush2.msra.mxu0 0.0
  %1148 = vmatprep.subr.mxu0 0.0
  %1149 = vmatpush2.msra.mxu0 0.0
  %1150 = vmatprep.subr.mxu0 0.0
  %1151 = vmatpush2.msra.mxu0 0.0
  %1152 = vmatprep.subr.mxu0 0.0
  %1153 = vmatpush2.msra.mxu0 0.0
  %1154 = vmatprep.subr.mxu0 0.0
  %1155 = vmatpush2.msra.mxu0 0.0
  %1156 = vmatprep.mubr.f32.mxu0 0.0
  %1157 = vmatmul.mubr.f32.gmra.mxu0 %v1087
  %v1158 = vpop.f32.mrf.mxu0
  %v1159 = vadd.f32 %v1091, %v1158
  %v1160 = vpop.f32.mrf.mxu0
  %1161 = vdwg.mxu0
  %v1162 = vtanh.pop %v1159
  %s1163 = scalar_lea.vmem [#allocation4], 16
  %1164 = vst [vmem:[%s1163] sm:$0xff] %v1162
  %s1165 = scalar_lea.vmem [#allocation3], 24
  %v1166 = vld [vmem:[%s1165] sm:$0xff]
  %1167 = vmatprep.subr.mxu0 0.0
  %1168 = vmatpush1.msra.mxu0 %v357
  %1169 = vmatprep.subr.mxu0 0.0
  %1170 = vmatpush1.msra.mxu0 %v356
  %1171 = vmatprep.subr.mxu0 0.0
  %1172 = vmatpush1.msra.mxu0 %v355
  %1173 = vmatprep.subr.mxu0 0.0
  %1174 = vmatpush1.msra.mxu0 %v354
  %1175 = vmatprep.subr.mxu0 0.0
  %1176 = vmatpush1.msra.mxu0 %v353
  %1177 = vmatprep.subr.mxu0 0.0
  %1178 = vmatpush1.msra.mxu0 %v352
  %1179 = vmatprep.subr.mxu0 0.0
  %1180 = vmatpush1.msra.mxu0 %v351
  %1181 = vmatprep.subr.mxu0 0.0
  %1182 = vmatpush1.msra.mxu0 %v350
  %1183 = vmatprep.subr.mxu0 0.0
  %1184 = vmatpush1.msra.mxu0 %v349
  %1185 = vmatprep.subr.mxu0 0.0
  %1186 = vmatpush1.msra.mxu0 %v348
  %1187 = vmatprep.subr.mxu0 0.0
  %1188 = vmatpush1.msra.mxu0 %v347
  %1189 = vmatprep.subr.mxu0 0.0
  %1190 = vmatpush1.msra.mxu0 %v346
  %1191 = vmatprep.subr.mxu0 0.0
  %1192 = vmatpush1.msra.mxu0 %v345
  %1193 = vmatprep.subr.mxu0 0.0
  %1194 = vmatpush1.msra.mxu0 %v344
  %1195 = vmatprep.subr.mxu0 0.0
  %1196 = vmatpush1.msra.mxu0 %v343
  %1197 = vmatprep.subr.mxu0 0.0
  %1198 = vmatpush1.msra.mxu0 %v342
  %1199 = vmatprep.subr.mxu0 0.0
  %1200 = vmatpush2.msra.mxu0 0.0
  %1201 = vmatprep.subr.mxu0 0.0
  %1202 = vmatpush2.msra.mxu0 0.0
  %1203 = vmatprep.subr.mxu0 0.0
  %1204 = vmatpush2.msra.mxu0 0.0
  %1205 = vmatprep.subr.mxu0 0.0
  %1206 = vmatpush2.msra.mxu0 0.0
  %1207 = vmatprep.subr.mxu0 0.0
  %1208 = vmatpush2.msra.mxu0 0.0
  %1209 = vmatprep.subr.mxu0 0.0
  %1210 = vmatpush2.msra.mxu0 0.0
  %1211 = vmatprep.subr.mxu0 0.0
  %1212 = vmatpush2.msra.mxu0 0.0
  %1213 = vmatprep.subr.mxu0 0.0
  %1214 = vmatpush2.msra.mxu0 0.0
  %1215 = vmatprep.subr.mxu0 0.0
  %1216 = vmatpush2.msra.mxu0 0.0
  %1217 = vmatprep.subr.mxu0 0.0
  %1218 = vmatpush2.msra.mxu0 0.0
  %1219 = vmatprep.subr.mxu0 0.0
  %1220 = vmatpush2.msra.mxu0 0.0
  %1221 = vmatprep.subr.mxu0 0.0
  %1222 = vmatpush2.msra.mxu0 0.0
  %1223 = vmatprep.subr.mxu0 0.0
  %1224 = vmatpush2.msra.mxu0 0.0
  %1225 = vmatprep.subr.mxu0 0.0
  %1226 = vmatpush2.msra.mxu0 0.0
  %1227 = vmatprep.subr.mxu0 0.0
  %1228 = vmatpush2.msra.mxu0 0.0
  %1229 = vmatprep.subr.mxu0 0.0
  %1230 = vmatpush2.msra.mxu0 0.0
  %1231 = vmatprep.mubr.f32.mxu0 0.0
  %1232 = vmatmul.mubr.f32.gmra.mxu0 %v1162
  %v1233 = vpop.f32.mrf.mxu0
  %v1234 = vadd.f32 %v1166, %v1233
  %v1235 = vpop.f32.mrf.mxu0
  %1236 = vdwg.mxu0
  %v1237 = vtanh.pop %v1234
  %s1238 = scalar_lea.vmem [#allocation4], 24
  %1239 = vst [vmem:[%s1238] sm:$0xff] %v1237
  %s1240 = scalar_lea.vmem [#allocation3], 32
  %v1241 = vld [vmem:[%s1240] sm:$0xff]
  %1242 = vmatprep.subr.mxu0 0.0
  %1243 = vmatpush1.msra.mxu0 %v357
  %1244 = vmatprep.subr.mxu0 0.0
  %1245 = vmatpush1.msra.mxu0 %v356
  %1246 = vmatprep.subr.mxu0 0.0
  %1247 = vmatpush1.msra.mxu0 %v355
  %1248 = vmatprep.subr.mxu0 0.0
  %1249 = vmatpush1.msra.mxu0 %v354
  %1250 = vmatprep.subr.mxu0 0.0
  %1251 = vmatpush1.msra.mxu0 %v353
  %1252 = vmatprep.subr.mxu0 0.0
  %1253 = vmatpush1.msra.mxu0 %v352
  %1254 = vmatprep.subr.mxu0 0.0
  %1255 = vmatpush1.msra.mxu0 %v351
  %1256 = vmatprep.subr.mxu0 0.0
  %1257 = vmatpush1.msra.mxu0 %v350
  %1258 = vmatprep.subr.mxu0 0.0
  %1259 = vmatpush1.msra.mxu0 %v349
  %1260 = vmatprep.subr.mxu0 0.0
  %1261 = vmatpush1.msra.mxu0 %v348
  %1262 = vmatprep.subr.mxu0 0.0
  %1263 = vmatpush1.msra.mxu0 %v347
  %1264 = vmatprep.subr.mxu0 0.0
  %1265 = vmatpush1.msra.mxu0 %v346
  %1266 = vmatprep.subr.mxu0 0.0
  %1267 = vmatpush1.msra.mxu0 %v345
  %1268 = vmatprep.subr.mxu0 0.0
  %1269 = vmatpush1.msra.mxu0 %v344
  %1270 = vmatprep.subr.mxu0 0.0
  %1271 = vmatpush1.msra.mxu0 %v343
  %1272 = vmatprep.subr.mxu0 0.0
  %1273 = vmatpush1.msra.mxu0 %v342
  %1274 = vmatprep.subr.mxu0 0.0
  %1275 = vmatpush2.msra.mxu0 0.0
  %1276 = vmatprep.subr.mxu0 0.0
  %1277 = vmatpush2.msra.mxu0 0.0
  %1278 = vmatprep.subr.mxu0 0.0
  %1279 = vmatpush2.msra.mxu0 0.0
  %1280 = vmatprep.subr.mxu0 0.0
  %1281 = vmatpush2.msra.mxu0 0.0
  %1282 = vmatprep.subr.mxu0 0.0
  %1283 = vmatpush2.msra.mxu0 0.0
  %1284 = vmatprep.subr.mxu0 0.0
  %1285 = vmatpush2.msra.mxu0 0.0
  %1286 = vmatprep.subr.mxu0 0.0
  %1287 = vmatpush2.msra.mxu0 0.0
  %1288 = vmatprep.subr.mxu0 0.0
  %1289 = vmatpush2.msra.mxu0 0.0
  %1290 = vmatprep.subr.mxu0 0.0
  %1291 = vmatpush2.msra.mxu0 0.0
  %1292 = vmatprep.subr.mxu0 0.0
  %1293 = vmatpush2.msra.mxu0 0.0
  %1294 = vmatprep.subr.mxu0 0.0
  %1295 = vmatpush2.msra.mxu0 0.0
  %1296 = vmatprep.subr.mxu0 0.0
  %1297 = vmatpush2.msra.mxu0 0.0
  %1298 = vmatprep.subr.mxu0 0.0
  %1299 = vmatpush2.msra.mxu0 0.0
  %1300 = vmatprep.subr.mxu0 0.0
  %1301 = vmatpush2.msra.mxu0 0.0
  %1302 = vmatprep.subr.mxu0 0.0
  %1303 = vmatpush2.msra.mxu0 0.0
  %1304 = vmatprep.subr.mxu0 0.0
  %1305 = vmatpush2.msra.mxu0 0.0
  %1306 = vmatprep.mubr.f32.mxu0 0.0
  %1307 = vmatmul.mubr.f32.gmra.mxu0 %v1237
  %v1308 = vpop.f32.mrf.mxu0
  %v1309 = vadd.f32 %v1241, %v1308
  %v1310 = vpop.f32.mrf.mxu0
  %1311 = vdwg.mxu0
  %v1312 = vtanh.pop %v1309
  %s1313 = scalar_lea.vmem [#allocation4], 32
  %1314 = vst [vmem:[%s1313] sm:$0xff] %v1312
  %s1315 = scalar_lea.vmem [#allocation3], 40
  %v1316 = vld [vmem:[%s1315] sm:$0xff]
  %1317 = vmatprep.subr.mxu0 0.0
  %1318 = vmatpush1.msra.mxu0 %v357
  %1319 = vmatprep.subr.mxu0 0.0
  %1320 = vmatpush1.msra.mxu0 %v356
  %1321 = vmatprep.subr.mxu0 0.0
  %1322 = vmatpush1.msra.mxu0 %v355
  %1323 = vmatprep.subr.mxu0 0.0
  %1324 = vmatpush1.msra.mxu0 %v354
  %1325 = vmatprep.subr.mxu0 0.0
  %1326 = vmatpush1.msra.mxu0 %v353
  %1327 = vmatprep.subr.mxu0 0.0
  %1328 = vmatpush1.msra.mxu0 %v352
  %1329 = vmatprep.subr.mxu0 0.0
  %1330 = vmatpush1.msra.mxu0 %v351
  %1331 = vmatprep.subr.mxu0 0.0
  %1332 = vmatpush1.msra.mxu0 %v350
  %1333 = vmatprep.subr.mxu0 0.0
  %1334 = vmatpush1.msra.mxu0 %v349
  %1335 = vmatprep.subr.mxu0 0.0
  %1336 = vmatpush1.msra.mxu0 %v348
  %1337 = vmatprep.subr.mxu0 0.0
  %1338 = vmatpush1.msra.mxu0 %v347
  %1339 = vmatprep.subr.mxu0 0.0
  %1340 = vmatpush1.msra.mxu0 %v346
  %1341 = vmatprep.subr.mxu0 0.0
  %1342 = vmatpush1.msra.mxu0 %v345
  %1343 = vmatprep.subr.mxu0 0.0
  %1344 = vmatpush1.msra.mxu0 %v344
  %1345 = vmatprep.subr.mxu0 0.0
  %1346 = vmatpush1.msra.mxu0 %v343
  %1347 = vmatprep.subr.mxu0 0.0
  %1348 = vmatpush1.msra.mxu0 %v342
  %1349 = vmatprep.subr.mxu0 0.0
  %1350 = vmatpush2.msra.mxu0 0.0
  %1351 = vmatprep.subr.mxu0 0.0
  %1352 = vmatpush2.msra.mxu0 0.0
  %1353 = vmatprep.subr.mxu0 0.0
  %1354 = vmatpush2.msra.mxu0 0.0
  %1355 = vmatprep.subr.mxu0 0.0
  %1356 = vmatpush2.msra.mxu0 0.0
  %1357 = vmatprep.subr.mxu0 0.0
  %1358 = vmatpush2.msra.mxu0 0.0
  %1359 = vmatprep.subr.mxu0 0.0
  %1360 = vmatpush2.msra.mxu0 0.0
  %1361 = vmatprep.subr.mxu0 0.0
  %1362 = vmatpush2.msra.mxu0 0.0
  %1363 = vmatprep.subr.mxu0 0.0
  %1364 = vmatpush2.msra.mxu0 0.0
  %1365 = vmatprep.subr.mxu0 0.0
  %1366 = vmatpush2.msra.mxu0 0.0
  %1367 = vmatprep.subr.mxu0 0.0
  %1368 = vmatpush2.msra.mxu0 0.0
  %1369 = vmatprep.subr.mxu0 0.0
  %1370 = vmatpush2.msra.mxu0 0.0
  %1371 = vmatprep.subr.mxu0 0.0
  %1372 = vmatpush2.msra.mxu0 0.0
  %1373 = vmatprep.subr.mxu0 0.0
  %1374 = vmatpush2.msra.mxu0 0.0
  %1375 = vmatprep.subr.mxu0 0.0
  %1376 = vmatpush2.msra.mxu0 0.0
  %1377 = vmatprep.subr.mxu0 0.0
  %1378 = vmatpush2.msra.mxu0 0.0
  %1379 = vmatprep.subr.mxu0 0.0
  %1380 = vmatpush2.msra.mxu0 0.0
  %1381 = vmatprep.mubr.f32.mxu0 0.0
  %1382 = vmatmul.mubr.f32.gmra.mxu0 %v1312
  %v1383 = vpop.f32.mrf.mxu0
  %v1384 = vadd.f32 %v1316, %v1383
  %v1385 = vpop.f32.mrf.mxu0
  %1386 = vdwg.mxu0
  %v1387 = vtanh.pop %v1384
  %s1388 = scalar_lea.vmem [#allocation4], 40
  %1389 = vst [vmem:[%s1388] sm:$0xff] %v1387
  %s1390 = scalar_lea.vmem [#allocation3], 48
  %v1391 = vld [vmem:[%s1390] sm:$0xff]
  %1392 = vmatprep.subr.mxu0 0.0
  %1393 = vmatpush1.msra.mxu0 %v357
  %1394 = vmatprep.subr.mxu0 0.0
  %1395 = vmatpush1.msra.mxu0 %v356
  %1396 = vmatprep.subr.mxu0 0.0
  %1397 = vmatpush1.msra.mxu0 %v355
  %1398 = vmatprep.subr.mxu0 0.0
  %1399 = vmatpush1.msra.mxu0 %v354
  %1400 = vmatprep.subr.mxu0 0.0
  %1401 = vmatpush1.msra.mxu0 %v353
  %1402 = vmatprep.subr.mxu0 0.0
  %1403 = vmatpush1.msra.mxu0 %v352
  %1404 = vmatprep.subr.mxu0 0.0
  %1405 = vmatpush1.msra.mxu0 %v351
  %1406 = vmatprep.subr.mxu0 0.0
  %1407 = vmatpush1.msra.mxu0 %v350
  %1408 = vmatprep.subr.mxu0 0.0
  %1409 = vmatpush1.msra.mxu0 %v349
  %1410 = vmatprep.subr.mxu0 0.0
  %1411 = vmatpush1.msra.mxu0 %v348
  %1412 = vmatprep.subr.mxu0 0.0
  %1413 = vmatpush1.msra.mxu0 %v347
  %1414 = vmatprep.subr.mxu0 0.0
  %1415 = vmatpush1.msra.mxu0 %v346
  %1416 = vmatprep.subr.mxu0 0.0
  %1417 = vmatpush1.msra.mxu0 %v345
  %1418 = vmatprep.subr.mxu0 0.0
  %1419 = vmatpush1.msra.mxu0 %v344
  %1420 = vmatprep.subr.mxu0 0.0
  %1421 = vmatpush1.msra.mxu0 %v343
  %1422 = vmatprep.subr.mxu0 0.0
  %1423 = vmatpush1.msra.mxu0 %v342
  %1424 = vmatprep.subr.mxu0 0.0
  %1425 = vmatpush2.msra.mxu0 0.0
  %1426 = vmatprep.subr.mxu0 0.0
  %1427 = vmatpush2.msra.mxu0 0.0
  %1428 = vmatprep.subr.mxu0 0.0
  %1429 = vmatpush2.msra.mxu0 0.0
  %1430 = vmatprep.subr.mxu0 0.0
  %1431 = vmatpush2.msra.mxu0 0.0
  %1432 = vmatprep.subr.mxu0 0.0
  %1433 = vmatpush2.msra.mxu0 0.0
  %1434 = vmatprep.subr.mxu0 0.0
  %1435 = vmatpush2.msra.mxu0 0.0
  %1436 = vmatprep.subr.mxu0 0.0
  %1437 = vmatpush2.msra.mxu0 0.0
  %1438 = vmatprep.subr.mxu0 0.0
  %1439 = vmatpush2.msra.mxu0 0.0
  %1440 = vmatprep.subr.mxu0 0.0
  %1441 = vmatpush2.msra.mxu0 0.0
  %1442 = vmatprep.subr.mxu0 0.0
  %1443 = vmatpush2.msra.mxu0 0.0
  %1444 = vmatprep.subr.mxu0 0.0
  %1445 = vmatpush2.msra.mxu0 0.0
  %1446 = vmatprep.subr.mxu0 0.0
  %1447 = vmatpush2.msra.mxu0 0.0
  %1448 = vmatprep.subr.mxu0 0.0
  %1449 = vmatpush2.msra.mxu0 0.0
  %1450 = vmatprep.subr.mxu0 0.0
  %1451 = vmatpush2.msra.mxu0 0.0
  %1452 = vmatprep.subr.mxu0 0.0
  %1453 = vmatpush2.msra.mxu0 0.0
  %1454 = vmatprep.subr.mxu0 0.0
  %1455 = vmatpush2.msra.mxu0 0.0
  %1456 = vmatprep.mubr.f32.mxu0 0.0
  %1457 = vmatmul.mubr.f32.gmra.mxu0 %v1387
  %v1458 = vpop.f32.mrf.mxu0
  %v1459 = vadd.f32 %v1391, %v1458
  %v1460 = vpop.f32.mrf.mxu0
  %1461 = vdwg.mxu0
  %v1462 = vtanh.pop %v1459
  %s1463 = scalar_lea.vmem [#allocation4], 48
  %1464 = vst [vmem:[%s1463] sm:$0xff] %v1462
  %s1465 = scalar_lea.vmem [#allocation3], 56
  %v1466 = vld [vmem:[%s1465] sm:$0xff]
  %1467 = vmatprep.subr.mxu0 0.0
  %1468 = vmatpush1.msra.mxu0 %v357
  %1469 = vmatprep.subr.mxu0 0.0
  %1470 = vmatpush1.msra.mxu0 %v356
  %1471 = vmatprep.subr.mxu0 0.0
  %1472 = vmatpush1.msra.mxu0 %v355
  %1473 = vmatprep.subr.mxu0 0.0
  %1474 = vmatpush1.msra.mxu0 %v354
  %1475 = vmatprep.subr.mxu0 0.0
  %1476 = vmatpush1.msra.mxu0 %v353
  %1477 = vmatprep.subr.mxu0 0.0
  %1478 = vmatpush1.msra.mxu0 %v352
  %1479 = vmatprep.subr.mxu0 0.0
  %1480 = vmatpush1.msra.mxu0 %v351
  %1481 = vmatprep.subr.mxu0 0.0
  %1482 = vmatpush1.msra.mxu0 %v350
  %1483 = vmatprep.subr.mxu0 0.0
  %1484 = vmatpush1.msra.mxu0 %v349
  %1485 = vmatprep.subr.mxu0 0.0
  %1486 = vmatpush1.msra.mxu0 %v348
  %1487 = vmatprep.subr.mxu0 0.0
  %1488 = vmatpush1.msra.mxu0 %v347
  %1489 = vmatprep.subr.mxu0 0.0
  %1490 = vmatpush1.msra.mxu0 %v346
  %1491 = vmatprep.subr.mxu0 0.0
  %1492 = vmatpush1.msra.mxu0 %v345
  %1493 = vmatprep.subr.mxu0 0.0
  %1494 = vmatpush1.msra.mxu0 %v344
  %1495 = vmatprep.subr.mxu0 0.0
  %1496 = vmatpush1.msra.mxu0 %v343
  %1497 = vmatprep.subr.mxu0 0.0
  %1498 = vmatpush1.msra.mxu0 %v342
  %1499 = vmatprep.subr.mxu0 0.0
  %1500 = vmatpush2.msra.mxu0 0.0
  %1501 = vmatprep.subr.mxu0 0.0
  %1502 = vmatpush2.msra.mxu0 0.0
  %1503 = vmatprep.subr.mxu0 0.0
  %1504 = vmatpush2.msra.mxu0 0.0
  %1505 = vmatprep.subr.mxu0 0.0
  %1506 = vmatpush2.msra.mxu0 0.0
  %1507 = vmatprep.subr.mxu0 0.0
  %1508 = vmatpush2.msra.mxu0 0.0
  %1509 = vmatprep.subr.mxu0 0.0
  %1510 = vmatpush2.msra.mxu0 0.0
  %1511 = vmatprep.subr.mxu0 0.0
  %1512 = vmatpush2.msra.mxu0 0.0
  %1513 = vmatprep.subr.mxu0 0.0
  %1514 = vmatpush2.msra.mxu0 0.0
  %1515 = vmatprep.subr.mxu0 0.0
  %1516 = vmatpush2.msra.mxu0 0.0
  %1517 = vmatprep.subr.mxu0 0.0
  %1518 = vmatpush2.msra.mxu0 0.0
  %1519 = vmatprep.subr.mxu0 0.0
  %1520 = vmatpush2.msra.mxu0 0.0
  %1521 = vmatprep.subr.mxu0 0.0
  %1522 = vmatpush2.msra.mxu0 0.0
  %1523 = vmatprep.subr.mxu0 0.0
  %1524 = vmatpush2.msra.mxu0 0.0
  %1525 = vmatprep.subr.mxu0 0.0
  %1526 = vmatpush2.msra.mxu0 0.0
  %1527 = vmatprep.subr.mxu0 0.0
  %1528 = vmatpush2.msra.mxu0 0.0
  %1529 = vmatprep.subr.mxu0 0.0
  %1530 = vmatpush2.msra.mxu0 0.0
  %1531 = vmatprep.mubr.f32.mxu0 0.0
  %1532 = vmatmul.mubr.f32.gmra.mxu0 %v1462
  %v1533 = vpop.f32.mrf.mxu0
  %v1534 = vadd.f32 %v1466, %v1533
  %v1535 = vpop.f32.mrf.mxu0
  %1536 = vdwg.mxu0
  %v1537 = vtanh.pop %v1534
  %s1538 = scalar_lea.vmem [#allocation4], 56
  %1539 = vst [vmem:[%s1538] sm:$0xff] %v1537
  %v1540 = vld [vmem:[#allocation4] sm:$0xff]
  %v1541 = vld [vmem:[#allocation4 + $0x8] sm:$0xff]
  %v1542 = vld [vmem:[#allocation4 + $0x10] sm:$0xff]
  %v1543 = vld [vmem:[#allocation4 + $0x18] sm:$0xff]
  %v1544 = vld [vmem:[#allocation4 + $0x20] sm:$0xff]
  %v1545 = vld [vmem:[#allocation4 + $0x28] sm:$0xff]
  %v1546 = vld [vmem:[#allocation4 + $0x30] sm:$0xff]
  %v1547 = vld [vmem:[#allocation4 + $0x38] sm:$0xff]
  %v1548 = vld [vmem:[%s9] sm:$0xff]
  %v1549 = vld [vmem:[%s9 + $0x8] sm:$0xff]
  %v1550 = vld [vmem:[%s9 + $0x10] sm:$0xff]
  %v1551 = vld [vmem:[%s9 + $0x18] sm:$0xff]
  %v1552 = vld [vmem:[%s9 + $0x20] sm:$0xff]
  %v1553 = vld [vmem:[%s9 + $0x28] sm:$0xff]
  %v1554 = vld [vmem:[%s9 + $0x30] sm:$0xff]
  %v1555 = vld [vmem:[%s9 + $0x38] sm:$0xff]
  %v1556 = vld [vmem:[%s9 + $0x40] sm:$0xff]
  %v1557 = vld [vmem:[%s9 + $0x48] sm:$0xff]
  %v1558 = vld [vmem:[%s9 + $0x50] sm:$0xff]
  %v1559 = vld [vmem:[%s9 + $0x58] sm:$0xff]
  %v1560 = vld [vmem:[%s9 + $0x60] sm:$0xff]
  %v1561 = vld [vmem:[%s9 + $0x68] sm:$0xff]
  %v1562 = vld [vmem:[%s9 + $0x70] sm:$0xff]
  %v1563 = vld [vmem:[%s9 + $0x78] sm:$0xff]
  %v1564 = vld [vmem:[%s10] sm:$0x1]
  %v1566 = vlaneseq
  %v1567 = vshrl.u32 %v1566, 7
  %v1568 = vsub.s32 0, %v1567
  %v1569 = vrot.slane %v1564, %v1568
  %1571 = vmatprep.subr.mxu0 0.0
  %1572 = vmatpush1.msra.mxu0 %v1563
  %1573 = vmatprep.subr.mxu0 0.0
  %1574 = vmatpush1.msra.mxu0 %v1562
  %1575 = vmatprep.subr.mxu0 0.0
  %1576 = vmatpush1.msra.mxu0 %v1561
  %1577 = vmatprep.subr.mxu0 0.0
  %1578 = vmatpush1.msra.mxu0 %v1560
  %1579 = vmatprep.subr.mxu0 0.0
  %1580 = vmatpush1.msra.mxu0 %v1559
  %1581 = vmatprep.subr.mxu0 0.0
  %1582 = vmatpush1.msra.mxu0 %v1558
  %1583 = vmatprep.subr.mxu0 0.0
  %1584 = vmatpush1.msra.mxu0 %v1557
  %1585 = vmatprep.subr.mxu0 0.0
  %1586 = vmatpush1.msra.mxu0 %v1556
  %1587 = vmatprep.subr.mxu0 0.0
  %1588 = vmatpush1.msra.mxu0 %v1555
  %1589 = vmatprep.subr.mxu0 0.0
  %1590 = vmatpush1.msra.mxu0 %v1554
  %1591 = vmatprep.subr.mxu0 0.0
  %1592 = vmatpush1.msra.mxu0 %v1553
  %1593 = vmatprep.subr.mxu0 0.0
  %1594 = vmatpush1.msra.mxu0 %v1552
  %1595 = vmatprep.subr.mxu0 0.0
  %1596 = vmatpush1.msra.mxu0 %v1551
  %1597 = vmatprep.subr.mxu0 0.0
  %1598 = vmatpush1.msra.mxu0 %v1550
  %1599 = vmatprep.subr.mxu0 0.0
  %1600 = vmatpush1.msra.mxu0 %v1549
  %1601 = vmatprep.subr.mxu0 0.0
  %1602 = vmatpush1.msra.mxu0 %v1548
  %1603 = vmatprep.subr.mxu0 0.0
  %1604 = vmatpush2.msra.mxu0 0.0
  %1605 = vmatprep.subr.mxu0 0.0
  %1606 = vmatpush2.msra.mxu0 0.0
  %1607 = vmatprep.subr.mxu0 0.0
  %1608 = vmatpush2.msra.mxu0 0.0
  %1609 = vmatprep.subr.mxu0 0.0
  %1610 = vmatpush2.msra.mxu0 0.0
  %1611 = vmatprep.subr.mxu0 0.0
  %1612 = vmatpush2.msra.mxu0 0.0
  %1613 = vmatprep.subr.mxu0 0.0
  %1614 = vmatpush2.msra.mxu0 0.0
  %1615 = vmatprep.subr.mxu0 0.0
  %1616 = vmatpush2.msra.mxu0 0.0
  %1617 = vmatprep.subr.mxu0 0.0
  %1618 = vmatpush2.msra.mxu0 0.0
  %1619 = vmatprep.subr.mxu0 0.0
  %1620 = vmatpush2.msra.mxu0 0.0
  %1621 = vmatprep.subr.mxu0 0.0
  %1622 = vmatpush2.msra.mxu0 0.0
  %1623 = vmatprep.subr.mxu0 0.0
  %1624 = vmatpush2.msra.mxu0 0.0
  %1625 = vmatprep.subr.mxu0 0.0
  %1626 = vmatpush2.msra.mxu0 0.0
  %1627 = vmatprep.subr.mxu0 0.0
  %1628 = vmatpush2.msra.mxu0 0.0
  %1629 = vmatprep.subr.mxu0 0.0
  %1630 = vmatpush2.msra.mxu0 0.0
  %1631 = vmatprep.subr.mxu0 0.0
  %1632 = vmatpush2.msra.mxu0 0.0
  %1633 = vmatprep.subr.mxu0 0.0
  %1634 = vmatpush2.msra.mxu0 0.0
  %1635 = vmatprep.mubr.f32.mxu0 0.0
  %1636 = vmatmul.mubr.f32.gmra.mxu0 %v1540
  %v1637 = vpop.f32.mrf.mxu0
  %v1638 = vadd.f32 %v1569, %v1637
  %v1639 = vpop.f32.mrf.mxu0
  %1640 = vmatprep.mubr.f32.mxu0 0.0
  %1641 = vmatmul.mubr.f32.gmra.mxu0 %v1541
  %v1642 = vpop.f32.mrf.mxu0
  %v1643 = vadd.f32 %v1569, %v1642
  %v1644 = vpop.f32.mrf.mxu0
  %1645 = vmatprep.mubr.f32.mxu0 0.0
  %1646 = vmatmul.mubr.f32.gmra.mxu0 %v1542
  %v1647 = vpop.f32.mrf.mxu0
  %v1648 = vadd.f32 %v1569, %v1647
  %v1649 = vpop.f32.mrf.mxu0
  %1650 = vmatprep.mubr.f32.mxu0 0.0
  %1651 = vmatmul.mubr.f32.gmra.mxu0 %v1543
  %v1652 = vpop.f32.mrf.mxu0
  %v1653 = vadd.f32 %v1569, %v1652
  %v1654 = vpop.f32.mrf.mxu0
  %1655 = vmatprep.mubr.f32.mxu0 0.0
  %1656 = vmatmul.mubr.f32.gmra.mxu0 %v1544
  %v1657 = vpop.f32.mrf.mxu0
  %v1658 = vadd.f32 %v1569, %v1657
  %v1659 = vpop.f32.mrf.mxu0
  %1660 = vmatprep.mubr.f32.mxu0 0.0
  %1661 = vmatmul.mubr.f32.gmra.mxu0 %v1545
  %v1662 = vpop.f32.mrf.mxu0
  %v1663 = vadd.f32 %v1569, %v1662
  %v1664 = vpop.f32.mrf.mxu0
  %1665 = vmatprep.mubr.f32.mxu0 0.0
  %1666 = vmatmul.mubr.f32.gmra.mxu0 %v1546
  %v1667 = vpop.f32.mrf.mxu0
  %v1668 = vadd.f32 %v1569, %v1667
  %v1669 = vpop.f32.mrf.mxu0
  %1670 = vmatprep.mubr.f32.mxu0 0.0
  %1671 = vmatmul.mubr.f32.gmra.mxu0 %v1547
  %v1672 = vpop.f32.mrf.mxu0
  %v1673 = vadd.f32 %v1569, %v1672
  %v1674 = vpop.f32.mrf.mxu0
  %1675 = vdwg.mxu0
  %1676 = vst [vmem:[%s11] sm:$0xff] %v1638
  %1677 = vst [vmem:[%s11 + $0x8] sm:$0xff] %v1643
  %1678 = vst [vmem:[%s11 + $0x10] sm:$0xff] %v1648
  %1679 = vst [vmem:[%s11 + $0x18] sm:$0xff] %v1653
  %1680 = vst [vmem:[%s11 + $0x20] sm:$0xff] %v1658
  %1681 = vst [vmem:[%s11 + $0x28] sm:$0xff] %v1663
  %1682 = vst [vmem:[%s11 + $0x30] sm:$0xff] %v1668
  %1683 = vst [vmem:[%s11 + $0x38] sm:$0xff] %v1673
  // Predicated region
  $region46: #{seq2seq_forward.1} parent=0 // pred_check
    _
  $region47: #{seq2seq_forward.1} parent=0 // pred_check_branch
    %1685 = sbr.rel (0) target = $region49
  $region48: #{seq2seq_forward.1} parent=0 // pred_region
    _
  $region49: #{seq2seq_forward.1} parent=0 // pred_fallthru
    _
  // Predicated region
  $region50: #{seq2seq_forward.1} parent=0 // pred_check
    _
  $region51: #{seq2seq_forward.1} parent=0 // pred_check_branch
    %1687 = sbr.rel (0) target = $region53
  $region52: #{seq2seq_forward.1} parent=0 // pred_region
    _
  $region53: #{seq2seq_forward.1} parent=0 // pred_fallthru
    _

</llo_original>
